<compile_context>
chip_gen: v5e
topology: v5e:2x2
jax: 0.10.0
libtpu: 0.0.40
codegen_flags: <defaults>
</compile_context>

<pallas_src>
import functools

import jax
import jax.numpy as jnp
from jax.experimental import pallas as pl
from jax.experimental.pallas import tpu as pltpu

EPS = 1e-5  # nn.BatchNorm2d default


def _lane_fold(row, group):
    """row: (1, L) with L = n_groups * group, n_groups a power of two.

    Returns (1, L) where every lane holds the sum over all lanes sharing the
    same (lane % group).  Log-tree of cyclic lane rolls (XLU) -> no relayout.
    """
    total = row.shape[-1]
    shift = group
    while shift < total:
        row = row + pltpu.roll(row, shift, axis=1)
        shift *= 2
    return row


def _bn_act(h, gamma_d, beta_d, *, group, count, relu):
    """Training-mode BatchNorm (+ optional ReLU) on a lane-dense (R, W*C) tile.

    Single pass: per-channel sum and sum-of-squares, folded into a per-lane
    scale/bias so normalization is one FMA per element.
    """
    s1 = _lane_fold(jnp.sum(h, axis=0, keepdims=True), group)
    s2 = _lane_fold(jnp.sum(h * h, axis=0, keepdims=True), group)
    inv_n = 1.0 / count
    mean = s1 * inv_n
    var = s2 * inv_n - mean * mean          # biased variance (BN training mode)
    scale = gamma_d * jax.lax.rsqrt(var + EPS)
    bias = beta_d - mean * scale
    out = h * scale + bias
    return jnp.maximum(out, 0.0) if relu else out


def _bottleneck_kernel(x_ref, w1_ref, w2_ref, w3_ref, sup_ref, sdn_ref,
                       g1_ref, b1_ref, g2_ref, b2_ref, g3_ref, b3_ref,
                       o_ref, *, width, planes, cout):
    rows = x_ref.shape[0]                 # N*H
    wp = width * planes                   # lane-dense depthwise width
    count = rows * width                  # N*H*W pixels per channel (BN stats)

    x = x_ref[...]                        # (N*H, W*Cin): input and residual

    # ---- conv1 (1x1): lane-dense block-diagonal matmul on the MXU ----------
    h = jnp.dot(x, w1_ref[...], preferred_element_type=jnp.float32)   # (N*H, W*planes)
    h = _bn_act(h, g1_ref[...], b1_ref[...], group=planes, count=count, relu=True)

    # ---- conv2 (3x3 depthwise, stride=1, pad=1) -----------------------------
    # kx shifts: two cyclic lane rolls by +-planes (XLU), computed once.
    # The wrap-around lanes at the image left/right edges are zeroed by zeros
    # baked into the pre-tiled tap rows (wrapper-side), so no masks here.
    left = pltpu.roll(h, planes, axis=1)          # value from col w-1 (wraps at w=0)
    right = pltpu.roll(h, wp - planes, axis=1)    # value from col w+1 (wraps at w=W-1)

    w2 = w2_ref[...]                              # (9, W*planes), taps pre-tiled + edge-masked
    combos = []
    for ky in range(3):
        t = 3 * ky
        combos.append(left * w2[t:t + 1, :]
                      + h * w2[t + 1:t + 2, :]
                      + right * w2[t + 2:t + 3, :])

    # ky shifts: boundary-aware row-shift matrices (tiny MXU matmuls; image
    # edges and batch boundaries are zeroed inside the matrices).
    acc = (jnp.dot(sup_ref[...], combos[0], preferred_element_type=jnp.float32)   # reads row h-1
           + combos[1]                                                            # reads row h
           + jnp.dot(sdn_ref[...], combos[2], preferred_element_type=jnp.float32))  # reads row h+1
    h = _bn_act(acc, g2_ref[...], b2_ref[...], group=planes, count=count, relu=True)

    # ---- conv3 (1x1) + bn3 + residual + relu, lane-dense store --------------
    y = jnp.dot(h, w3_ref[...], preferred_element_type=jnp.float32)   # (N*H, W*Cout)
    y = _bn_act(y, g3_ref[...], b3_ref[...], group=cout, count=count, relu=False)
    o_ref[...] = jnp.maximum(y + x, 0.0)


def bottleneck_forward(x_nchw, params):
    """Fused Bottleneck forward.  x_nchw: (N, Cin, H, W) float32 (PyTorch layout)."""
    w1, g1, b1, w2, g2, b2, w3, g3, b3 = params
    N, Cin, H, W = x_nchw.shape
    planes = w1.shape[1]
    cout = w3.shape[1]

    # Only the stride=1 / downsample=None / depthwise-conv2 path is supported.
    assert cout == Cin, "residual add requires inplanes == planes * expansion"
    assert w2.shape == (9, planes), "conv2 must be depthwise (groups == planes)"
    assert W > 0 and (W & (W - 1)) == 0, "lane-fold reduction needs power-of-two W"

    # NCHW -> NHWC -> lane-dense 2D (N*H, W*C).
    x_d = jnp.transpose(x_nchw, (0, 2, 3, 1)).reshape(N * H, W * Cin)

    # 1x1 convs as block-diagonal matmuls in the lane-dense layout.
    eye_w = jnp.eye(W, dtype=jnp.float32)
    w1_bd = jnp.kron(eye_w, w1)                            # (W*Cin,    W*planes)
    w3_bd = jnp.kron(eye_w, w3)                            # (W*planes, W*Cout)

    # Depthwise taps pre-tiled to the dense lane layout, with the image
    # left/right edge zeros baked into the kx = -1 / +1 tap rows so the kernel
    # can use unmasked cyclic lane rolls.
    w2_d = jnp.tile(w2, (1, W))                            # (9, W*planes)
    w_idx = jnp.repeat(jnp.arange(W), planes)              # lane -> image column w
    left_ok = (w_idx > 0).astype(jnp.float32)[None, :]     # zero where w == 0
    right_ok = (w_idx < W - 1).astype(jnp.float32)[None, :]  # zero where w == W-1
    kx = jnp.tile(jnp.arange(3), 3)[:, None]               # tap row t -> kx = t % 3
    edge_mask = jnp.where(kx == 0, left_ok, jnp.where(kx == 2, right_ok, 1.0))
    w2_d = w2_d * edge_mask

    # BN affines pre-tiled to the dense lane layout.
    g1_d, b1_d = jnp.tile(g1, (1, W)), jnp.tile(b1, (1, W))
    g2_d, b2_d = jnp.tile(g2, (1, W)), jnp.tile(b2, (1, W))
    g3_d, b3_d = jnp.tile(g3, (1, W)), jnp.tile(b3, (1, W))

    # Boundary-aware row-shift matrices for the 3x3 conv's ky taps.
    r = jnp.arange(N * H)
    s_up = ((r[:, None] - 1 == r[None, :]) & ((r % H) != 0)[:, None]).astype(jnp.float32)
    s_dn = ((r[:, None] + 1 == r[None, :]) & ((r % H) != H - 1)[:, None]).astype(jnp.float32)

    kernel = functools.partial(_bottleneck_kernel, width=W, planes=planes, cout=cout)
    n_in = 12
    out_d = pl.pallas_call(
        kernel,
        out_shape=jax.ShapeDtypeStruct((N * H, W * cout), jnp.float32),
        in_specs=[pl.BlockSpec(memory_space=pltpu.MemorySpace.VMEM)] * n_in,
        out_specs=pl.BlockSpec(memory_space=pltpu.MemorySpace.VMEM),
    )(x_d, w1_bd, w2_d, w3_bd, s_up, s_dn,
      g1_d, b1_d, g2_d, b2_d, g3_d, b3_d)

    return jnp.transpose(out_d.reshape(N, H, W, cout), (0, 3, 1, 2))   # -> NCHW


def reference_forward(x_nchw, params):
    """Pure-JAX reference (lax.conv, f32-precise) mirroring PyTorch semantics."""
    w1, g1, b1, w2, g2, b2, w3, g3, b3 = params
    planes = w1.shape[1]
    x = x_nchw.astype(jnp.float32)
    prec = jax.lax.Precision.HIGHEST

    def bn(y, g, b):
        mean = jnp.mean(y, axis=(0, 2, 3), keepdims=True)
        var = jnp.mean((y - mean) ** 2, axis=(0, 2, 3), keepdims=True)
        return (y - mean) / jnp.sqrt(var + EPS) * g.reshape(1, -1, 1, 1) + b.reshape(1, -1, 1, 1)

    dn = ('NCHW', 'OIHW', 'NCHW')
    k1 = jnp.transpose(w1, (1, 0))[:, :, None, None]                        # (planes, Cin, 1, 1)
    h = jax.lax.conv_general_dilated(x, k1, (1, 1), 'VALID',
                                     dimension_numbers=dn, precision=prec)
    h = jax.nn.relu(bn(h, g1, b1))

    k2 = jnp.transpose(w2.reshape(3, 3, planes), (2, 0, 1))[:, None, :, :]  # (planes,1,3,3)
    h = jax.lax.conv_general_dilated(h, k2, (1, 1), ((1, 1), (1, 1)),
                                     dimension_numbers=dn,
                                     feature_group_count=planes, precision=prec)
    h = jax.nn.relu(bn(h, g2, b2))

    k3 = jnp.transpose(w3, (1, 0))[:, :, None, None]                        # (Cout, planes, 1, 1)
    h = jax.lax.conv_general_dilated(h, k3, (1, 1), 'VALID',
                                     dimension_numbers=dn, precision=prec)
    h = bn(h, g3, b3)
    return jax.nn.relu(h + x)


if __name__ == "__main__":
    # Bottleneck(inplanes=64, planes=32): conv2 has groups=32 -> depthwise,
    # and inplanes == planes * expansion so the residual add is valid.
    N, inplanes, planes, H, W = 2, 64, 32, 8, 8
    Cout = planes * 2

    key = jax.random.PRNGKey(0)
    ks = jax.random.split(key, 10)
    x = jax.random.normal(ks[0], (N, inplanes, H, W), jnp.float32)
    # conv weights stored as (Cin, Cout) for the channel matmuls,
    # and (9, planes) for the depthwise 3x3 taps (row = ky*3 + kx).
    w1 = jax.random.normal(ks[1], (inplanes, planes), jnp.float32) / jnp.sqrt(inplanes)
    w2 = jax.random.normal(ks[2], (9, planes), jnp.float32) / 3.0
    w3 = jax.random.normal(ks[3], (planes, Cout), jnp.float32) / jnp.sqrt(planes)
    g1 = 1.0 + 0.1 * jax.random.normal(ks[4], (1, planes), jnp.float32)
    b1 = 0.1 * jax.random.normal(ks[5], (1, planes), jnp.float32)
    g2 = 1.0 + 0.1 * jax.random.normal(ks[6], (1, planes), jnp.float32)
    b2 = 0.1 * jax.random.normal(ks[7], (1, planes), jnp.float32)
    g3 = 1.0 + 0.1 * jax.random.normal(ks[8], (1, Cout), jnp.float32)
    b3 = 0.1 * jax.random.normal(ks[9], (1, Cout), jnp.float32)
    params = (w1, g1, b1, w2, g2, b2, w3, g3, b3)

    out = jax.block_until_ready(jax.jit(bottleneck_forward)(x, params))
    ref = reference_forward(x, params)
    max_err = float(jnp.max(jnp.abs(out - ref)))
    if not jnp.allclose(out, ref, atol=1e-3, rtol=1e-3):
        raise AssertionError(f"Pallas kernel mismatch vs JAX reference (max abs err {max_err})")
    print("KERNEL_OK")
</pallas_src>

<mosaic_0001>
module attributes {stable_mosaic.version = 11 : i64} {
  func.func @_bottleneck_kernel(%arg0: memref<16x512xf32, #tpu.memory_space<vmem>>, %arg1: memref<512x256xf32, #tpu.memory_space<vmem>>, %arg2: memref<9x256xf32, #tpu.memory_space<vmem>>, %arg3: memref<256x512xf32, #tpu.memory_space<vmem>>, %arg4: memref<16x16xf32, #tpu.memory_space<vmem>>, %arg5: memref<16x16xf32, #tpu.memory_space<vmem>>, %arg6: memref<1x256xf32, #tpu.memory_space<vmem>>, %arg7: memref<1x256xf32, #tpu.memory_space<vmem>>, %arg8: memref<1x256xf32, #tpu.memory_space<vmem>>, %arg9: memref<1x256xf32, #tpu.memory_space<vmem>>, %arg10: memref<1x512xf32, #tpu.memory_space<vmem>>, %arg11: memref<1x512xf32, #tpu.memory_space<vmem>>, %arg12: memref<16x512xf32, #tpu.memory_space<vmem>>) attributes {dimension_semantics = [], scalar_prefetch = 0 : i64, scratch_operands = 0 : i64, tpu.core_type = #tpu.core_type<tc>} {
    %c0 = arith.constant 0 : index
    %c0_0 = arith.constant 0 : index
    %0 = vector.load %arg0[%c0, %c0_0] : memref<16x512xf32, #tpu.memory_space<vmem>>, vector<16x512xf32>
    %c0_1 = arith.constant 0 : index
    %c0_2 = arith.constant 0 : index
    %1 = vector.load %arg1[%c0_1, %c0_2] : memref<512x256xf32, #tpu.memory_space<vmem>>, vector<512x256xf32>
    %cst = arith.constant dense<0.000000e+00> : vector<16x256xf32>
    %2 = tpu.matmul %0, %1, %cst {dimension_numbers = #tpu.dot_dimension_numbers<[1], [0], [0], [1], [0, 0, 1, 1], [], []>} : vector<16x512xf32>, vector<512x256xf32>, vector<16x256xf32> -> vector<16x256xf32>
    %c0_3 = arith.constant 0 : index
    %c0_4 = arith.constant 0 : index
    %3 = vector.load %arg6[%c0_3, %c0_4] : memref<1x256xf32, #tpu.memory_space<vmem>>, vector<1x256xf32>
    %c0_5 = arith.constant 0 : index
    %c0_6 = arith.constant 0 : index
    %4 = vector.load %arg7[%c0_5, %c0_6] : memref<1x256xf32, #tpu.memory_space<vmem>>, vector<1x256xf32>
    %cst_7 = arith.constant dense<0.000000e+00> : vector<256xf32>
    %5 = vector.multi_reduction <add>, %2, %cst_7 [0] : vector<16x256xf32> to vector<256xf32>
    %6 = vector.shape_cast %5 : vector<256xf32> to vector<1x256xf32>
    %c32_i32 = arith.constant 32 : i32
    %7 = tpu.dynamic_rotate %6 by %c32_i32 dim 1 : vector<1x256xf32>, i32 -> vector<1x256xf32>
    %8 = arith.addf %6, %7 : vector<1x256xf32>
    %c64_i32 = arith.constant 64 : i32
    %9 = tpu.dynamic_rotate %8 by %c64_i32 dim 1 : vector<1x256xf32>, i32 -> vector<1x256xf32>
    %10 = arith.addf %8, %9 : vector<1x256xf32>
    %c128_i32 = arith.constant 128 : i32
    %11 = tpu.dynamic_rotate %10 by %c128_i32 dim 1 : vector<1x256xf32>, i32 -> vector<1x256xf32>
    %12 = arith.addf %10, %11 : vector<1x256xf32>
    %13 = arith.mulf %2, %2 : vector<16x256xf32>
    %cst_8 = arith.constant dense<0.000000e+00> : vector<256xf32>
    %14 = vector.multi_reduction <add>, %13, %cst_8 [0] : vector<16x256xf32> to vector<256xf32>
    %15 = vector.shape_cast %14 : vector<256xf32> to vector<1x256xf32>
    %c32_i32_9 = arith.constant 32 : i32
    %16 = tpu.dynamic_rotate %15 by %c32_i32_9 dim 1 : vector<1x256xf32>, i32 -> vector<1x256xf32>
    %17 = arith.addf %15, %16 : vector<1x256xf32>
    %c64_i32_10 = arith.constant 64 : i32
    %18 = tpu.dynamic_rotate %17 by %c64_i32_10 dim 1 : vector<1x256xf32>, i32 -> vector<1x256xf32>
    %19 = arith.addf %17, %18 : vector<1x256xf32>
    %c128_i32_11 = arith.constant 128 : i32
    %20 = tpu.dynamic_rotate %19 by %c128_i32_11 dim 1 : vector<1x256xf32>, i32 -> vector<1x256xf32>
    %21 = arith.addf %19, %20 : vector<1x256xf32>
    %cst_12 = arith.constant 7.812500e-03 : f32
    %22 = vector.broadcast %cst_12 : f32 to vector<1x256xf32>
    %23 = arith.mulf %12, %22 : vector<1x256xf32>
    %cst_13 = arith.constant 7.812500e-03 : f32
    %24 = vector.broadcast %cst_13 : f32 to vector<1x256xf32>
    %25 = arith.mulf %21, %24 : vector<1x256xf32>
    %26 = arith.mulf %23, %23 : vector<1x256xf32>
    %27 = arith.subf %25, %26 : vector<1x256xf32>
    %cst_14 = arith.constant 9.99999974E-6 : f32
    %28 = vector.broadcast %cst_14 : f32 to vector<1x256xf32>
    %29 = arith.addf %27, %28 : vector<1x256xf32>
    %30 = math.rsqrt %29 : vector<1x256xf32>
    %31 = arith.mulf %3, %30 : vector<1x256xf32>
    %32 = arith.mulf %23, %31 : vector<1x256xf32>
    %33 = arith.subf %4, %32 : vector<1x256xf32>
    %34 = vector.broadcast %31 : vector<1x256xf32> to vector<16x256xf32>
    %35 = arith.mulf %2, %34 : vector<16x256xf32>
    %36 = vector.broadcast %33 : vector<1x256xf32> to vector<16x256xf32>
    %37 = arith.addf %35, %36 : vector<16x256xf32>
    %cst_15 = arith.constant 0.000000e+00 : f32
    %38 = vector.broadcast %cst_15 : f32 to vector<16x256xf32>
    %39 = arith.maximumf %37, %38 : vector<16x256xf32>
    %c32_i32_16 = arith.constant 32 : i32
    %40 = tpu.dynamic_rotate %39 by %c32_i32_16 dim 1 : vector<16x256xf32>, i32 -> vector<16x256xf32>
    %c224_i32 = arith.constant 224 : i32
    %41 = tpu.dynamic_rotate %39 by %c224_i32 dim 1 : vector<16x256xf32>, i32 -> vector<16x256xf32>
    %c0_17 = arith.constant 0 : index
    %c0_18 = arith.constant 0 : index
    %42 = vector.load %arg2[%c0_17, %c0_18] : memref<9x256xf32, #tpu.memory_space<vmem>>, vector<9x256xf32>
    %43 = vector.extract_strided_slice %42 {offsets = [0, 0], sizes = [1, 256], strides = [1, 1]} : vector<9x256xf32> to vector<1x256xf32>
    %44 = vector.broadcast %43 : vector<1x256xf32> to vector<16x256xf32>
    %45 = arith.mulf %40, %44 : vector<16x256xf32>
    %46 = vector.extract_strided_slice %42 {offsets = [1, 0], sizes = [1, 256], strides = [1, 1]} : vector<9x256xf32> to vector<1x256xf32>
    %47 = vector.broadcast %46 : vector<1x256xf32> to vector<16x256xf32>
    %48 = arith.mulf %39, %47 : vector<16x256xf32>
    %49 = arith.addf %45, %48 : vector<16x256xf32>
    %50 = vector.extract_strided_slice %42 {offsets = [2, 0], sizes = [1, 256], strides = [1, 1]} : vector<9x256xf32> to vector<1x256xf32>
    %51 = vector.broadcast %50 : vector<1x256xf32> to vector<16x256xf32>
    %52 = arith.mulf %41, %51 : vector<16x256xf32>
    %53 = arith.addf %49, %52 : vector<16x256xf32>
    %54 = vector.extract_strided_slice %42 {offsets = [3, 0], sizes = [1, 256], strides = [1, 1]} : vector<9x256xf32> to vector<1x256xf32>
    %55 = vector.broadcast %54 : vector<1x256xf32> to vector<16x256xf32>
    %56 = arith.mulf %40, %55 : vector<16x256xf32>
    %57 = vector.extract_strided_slice %42 {offsets = [4, 0], sizes = [1, 256], strides = [1, 1]} : vector<9x256xf32> to vector<1x256xf32>
    %58 = vector.broadcast %57 : vector<1x256xf32> to vector<16x256xf32>
    %59 = arith.mulf %39, %58 : vector<16x256xf32>
    %60 = arith.addf %56, %59 : vector<16x256xf32>
    %61 = vector.extract_strided_slice %42 {offsets = [5, 0], sizes = [1, 256], strides = [1, 1]} : vector<9x256xf32> to vector<1x256xf32>
    %62 = vector.broadcast %61 : vector<1x256xf32> to vector<16x256xf32>
    %63 = arith.mulf %41, %62 : vector<16x256xf32>
    %64 = arith.addf %60, %63 : vector<16x256xf32>
    %65 = vector.extract_strided_slice %42 {offsets = [6, 0], sizes = [1, 256], strides = [1, 1]} : vector<9x256xf32> to vector<1x256xf32>
    %66 = vector.broadcast %65 : vector<1x256xf32> to vector<16x256xf32>
    %67 = arith.mulf %40, %66 : vector<16x256xf32>
    %68 = vector.extract_strided_slice %42 {offsets = [7, 0], sizes = [1, 256], strides = [1, 1]} : vector<9x256xf32> to vector<1x256xf32>
    %69 = vector.broadcast %68 : vector<1x256xf32> to vector<16x256xf32>
    %70 = arith.mulf %39, %69 : vector<16x256xf32>
    %71 = arith.addf %67, %70 : vector<16x256xf32>
    %72 = vector.extract_strided_slice %42 {offsets = [8, 0], sizes = [1, 256], strides = [1, 1]} : vector<9x256xf32> to vector<1x256xf32>
    %73 = vector.broadcast %72 : vector<1x256xf32> to vector<16x256xf32>
    %74 = arith.mulf %41, %73 : vector<16x256xf32>
    %75 = arith.addf %71, %74 : vector<16x256xf32>
    %c0_19 = arith.constant 0 : index
    %c0_20 = arith.constant 0 : index
    %76 = vector.load %arg4[%c0_19, %c0_20] : memref<16x16xf32, #tpu.memory_space<vmem>>, vector<16x16xf32>
    %cst_21 = arith.constant dense<0.000000e+00> : vector<16x256xf32>
    %77 = tpu.matmul %76, %53, %cst_21 {dimension_numbers = #tpu.dot_dimension_numbers<[1], [0], [0], [1], [0, 0, 1, 1], [], []>} : vector<16x16xf32>, vector<16x256xf32>, vector<16x256xf32> -> vector<16x256xf32>
    %78 = arith.addf %77, %64 : vector<16x256xf32>
    %c0_22 = arith.constant 0 : index
    %c0_23 = arith.constant 0 : index
    %79 = vector.load %arg5[%c0_22, %c0_23] : memref<16x16xf32, #tpu.memory_space<vmem>>, vector<16x16xf32>
    %cst_24 = arith.constant dense<0.000000e+00> : vector<16x256xf32>
    %80 = tpu.matmul %79, %75, %cst_24 {dimension_numbers = #tpu.dot_dimension_numbers<[1], [0], [0], [1], [0, 0, 1, 1], [], []>} : vector<16x16xf32>, vector<16x256xf32>, vector<16x256xf32> -> vector<16x256xf32>
    %81 = arith.addf %78, %80 : vector<16x256xf32>
    %c0_25 = arith.constant 0 : index
    %c0_26 = arith.constant 0 : index
    %82 = vector.load %arg8[%c0_25, %c0_26] : memref<1x256xf32, #tpu.memory_space<vmem>>, vector<1x256xf32>
    %c0_27 = arith.constant 0 : index
    %c0_28 = arith.constant 0 : index
    %83 = vector.load %arg9[%c0_27, %c0_28] : memref<1x256xf32, #tpu.memory_space<vmem>>, vector<1x256xf32>
    %cst_29 = arith.constant dense<0.000000e+00> : vector<256xf32>
    %84 = vector.multi_reduction <add>, %81, %cst_29 [0] : vector<16x256xf32> to vector<256xf32>
    %85 = vector.shape_cast %84 : vector<256xf32> to vector<1x256xf32>
    %c32_i32_30 = arith.constant 32 : i32
    %86 = tpu.dynamic_rotate %85 by %c32_i32_30 dim 1 : vector<1x256xf32>, i32 -> vector<1x256xf32>
    %87 = arith.addf %85, %86 : vector<1x256xf32>
    %c64_i32_31 = arith.constant 64 : i32
    %88 = tpu.dynamic_rotate %87 by %c64_i32_31 dim 1 : vector<1x256xf32>, i32 -> vector<1x256xf32>
    %89 = arith.addf %87, %88 : vector<1x256xf32>
    %c128_i32_32 = arith.constant 128 : i32
    %90 = tpu.dynamic_rotate %89 by %c128_i32_32 dim 1 : vector<1x256xf32>, i32 -> vector<1x256xf32>
    %91 = arith.addf %89, %90 : vector<1x256xf32>
    %92 = arith.mulf %81, %81 : vector<16x256xf32>
    %cst_33 = arith.constant dense<0.000000e+00> : vector<256xf32>
    %93 = vector.multi_reduction <add>, %92, %cst_33 [0] : vector<16x256xf32> to vector<256xf32>
    %94 = vector.shape_cast %93 : vector<256xf32> to vector<1x256xf32>
    %c32_i32_34 = arith.constant 32 : i32
    %95 = tpu.dynamic_rotate %94 by %c32_i32_34 dim 1 : vector<1x256xf32>, i32 -> vector<1x256xf32>
    %96 = arith.addf %94, %95 : vector<1x256xf32>
    %c64_i32_35 = arith.constant 64 : i32
    %97 = tpu.dynamic_rotate %96 by %c64_i32_35 dim 1 : vector<1x256xf32>, i32 -> vector<1x256xf32>
    %98 = arith.addf %96, %97 : vector<1x256xf32>
    %c128_i32_36 = arith.constant 128 : i32
    %99 = tpu.dynamic_rotate %98 by %c128_i32_36 dim 1 : vector<1x256xf32>, i32 -> vector<1x256xf32>
    %100 = arith.addf %98, %99 : vector<1x256xf32>
    %cst_37 = arith.constant 7.812500e-03 : f32
    %101 = vector.broadcast %cst_37 : f32 to vector<1x256xf32>
    %102 = arith.mulf %91, %101 : vector<1x256xf32>
    %cst_38 = arith.constant 7.812500e-03 : f32
    %103 = vector.broadcast %cst_38 : f32 to vector<1x256xf32>
    %104 = arith.mulf %100, %103 : vector<1x256xf32>
    %105 = arith.mulf %102, %102 : vector<1x256xf32>
    %106 = arith.subf %104, %105 : vector<1x256xf32>
    %cst_39 = arith.constant 9.99999974E-6 : f32
    %107 = vector.broadcast %cst_39 : f32 to vector<1x256xf32>
    %108 = arith.addf %106, %107 : vector<1x256xf32>
    %109 = math.rsqrt %108 : vector<1x256xf32>
    %110 = arith.mulf %82, %109 : vector<1x256xf32>
    %111 = arith.mulf %102, %110 : vector<1x256xf32>
    %112 = arith.subf %83, %111 : vector<1x256xf32>
    %113 = vector.broadcast %110 : vector<1x256xf32> to vector<16x256xf32>
    %114 = arith.mulf %81, %113 : vector<16x256xf32>
    %115 = vector.broadcast %112 : vector<1x256xf32> to vector<16x256xf32>
    %116 = arith.addf %114, %115 : vector<16x256xf32>
    %cst_40 = arith.constant 0.000000e+00 : f32
    %117 = vector.broadcast %cst_40 : f32 to vector<16x256xf32>
    %118 = arith.maximumf %116, %117 : vector<16x256xf32>
    %c0_41 = arith.constant 0 : index
    %c0_42 = arith.constant 0 : index
    %119 = vector.load %arg3[%c0_41, %c0_42] : memref<256x512xf32, #tpu.memory_space<vmem>>, vector<256x512xf32>
    %cst_43 = arith.constant dense<0.000000e+00> : vector<16x512xf32>
    %120 = tpu.matmul %118, %119, %cst_43 {dimension_numbers = #tpu.dot_dimension_numbers<[1], [0], [0], [1], [0, 0, 1, 1], [], []>} : vector<16x256xf32>, vector<256x512xf32>, vector<16x512xf32> -> vector<16x512xf32>
    %c0_44 = arith.constant 0 : index
    %c0_45 = arith.constant 0 : index
    %121 = vector.load %arg10[%c0_44, %c0_45] : memref<1x512xf32, #tpu.memory_space<vmem>>, vector<1x512xf32>
    %c0_46 = arith.constant 0 : index
    %c0_47 = arith.constant 0 : index
    %122 = vector.load %arg11[%c0_46, %c0_47] : memref<1x512xf32, #tpu.memory_space<vmem>>, vector<1x512xf32>
    %cst_48 = arith.constant dense<0.000000e+00> : vector<512xf32>
    %123 = vector.multi_reduction <add>, %120, %cst_48 [0] : vector<16x512xf32> to vector<512xf32>
    %124 = vector.shape_cast %123 : vector<512xf32> to vector<1x512xf32>
    %c64_i32_49 = arith.constant 64 : i32
    %125 = tpu.dynamic_rotate %124 by %c64_i32_49 dim 1 : vector<1x512xf32>, i32 -> vector<1x512xf32>
    %126 = arith.addf %124, %125 : vector<1x512xf32>
    %c128_i32_50 = arith.constant 128 : i32
    %127 = tpu.dynamic_rotate %126 by %c128_i32_50 dim 1 : vector<1x512xf32>, i32 -> vector<1x512xf32>
    %128 = arith.addf %126, %127 : vector<1x512xf32>
    %c256_i32 = arith.constant 256 : i32
    %129 = tpu.dynamic_rotate %128 by %c256_i32 dim 1 : vector<1x512xf32>, i32 -> vector<1x512xf32>
    %130 = arith.addf %128, %129 : vector<1x512xf32>
    %131 = arith.mulf %120, %120 : vector<16x512xf32>
    %cst_51 = arith.constant dense<0.000000e+00> : vector<512xf32>
    %132 = vector.multi_reduction <add>, %131, %cst_51 [0] : vector<16x512xf32> to vector<512xf32>
    %133 = vector.shape_cast %132 : vector<512xf32> to vector<1x512xf32>
    %c64_i32_52 = arith.constant 64 : i32
    %134 = tpu.dynamic_rotate %133 by %c64_i32_52 dim 1 : vector<1x512xf32>, i32 -> vector<1x512xf32>
    %135 = arith.addf %133, %134 : vector<1x512xf32>
    %c128_i32_53 = arith.constant 128 : i32
    %136 = tpu.dynamic_rotate %135 by %c128_i32_53 dim 1 : vector<1x512xf32>, i32 -> vector<1x512xf32>
    %137 = arith.addf %135, %136 : vector<1x512xf32>
    %c256_i32_54 = arith.constant 256 : i32
    %138 = tpu.dynamic_rotate %137 by %c256_i32_54 dim 1 : vector<1x512xf32>, i32 -> vector<1x512xf32>
    %139 = arith.addf %137, %138 : vector<1x512xf32>
    %cst_55 = arith.constant 7.812500e-03 : f32
    %140 = vector.broadcast %cst_55 : f32 to vector<1x512xf32>
    %141 = arith.mulf %130, %140 : vector<1x512xf32>
    %cst_56 = arith.constant 7.812500e-03 : f32
    %142 = vector.broadcast %cst_56 : f32 to vector<1x512xf32>
    %143 = arith.mulf %139, %142 : vector<1x512xf32>
    %144 = arith.mulf %141, %141 : vector<1x512xf32>
    %145 = arith.subf %143, %144 : vector<1x512xf32>
    %cst_57 = arith.constant 9.99999974E-6 : f32
    %146 = vector.broadcast %cst_57 : f32 to vector<1x512xf32>
    %147 = arith.addf %145, %146 : vector<1x512xf32>
    %148 = math.rsqrt %147 : vector<1x512xf32>
    %149 = arith.mulf %121, %148 : vector<1x512xf32>
    %150 = arith.mulf %141, %149 : vector<1x512xf32>
    %151 = arith.subf %122, %150 : vector<1x512xf32>
    %152 = vector.broadcast %149 : vector<1x512xf32> to vector<16x512xf32>
    %153 = arith.mulf %120, %152 : vector<16x512xf32>
    %154 = vector.broadcast %151 : vector<1x512xf32> to vector<16x512xf32>
    %155 = arith.addf %153, %154 : vector<16x512xf32>
    %156 = arith.addf %155, %0 : vector<16x512xf32>
    %cst_58 = arith.constant 0.000000e+00 : f32
    %157 = vector.broadcast %cst_58 : f32 to vector<16x512xf32>
    %158 = arith.maximumf %156, %157 : vector<16x512xf32>
    %c0_59 = arith.constant 0 : index
    %c0_60 = arith.constant 0 : index
    %159 = vector.load %arg12[%c0_59, %c0_60] : memref<16x512xf32, #tpu.memory_space<vmem>>, vector<16x512xf32>
    tpu.vector_store %arg12[%c0_59, %c0_60], %158 {strides = array<i32>} : memref<16x512xf32, #tpu.memory_space<vmem>>, vector<16x512xf32>,
    return
  }
}

</mosaic_0001>

<llo_original>
// kernel: tile.44
$region0: #{tile.44}
  %s0 = inlined_call_operand.vmem [shape: f32[9,8,32], index: 0, kind: input, shape index: {}]
  %s1 = inlined_call_operand.vmem [shape: f32[9,256], index: 1, kind: output, shape index: {}]
  %v2 = vld [vmem:[%s0] ss:$4 sm:$0xff]
  %vm3 = vcmask 261120
  %4 = vst.msk [vmem:[%s1] ss:$8 sm:$0x3] %vm3, %v2
  %s5 = scalar_lea.vmem %s1, 4294967281
  %6 = vst.msk [vmem:[%s5] ss:$8 sm:$0xc] %vm3, %v2
  %s7 = scalar_lea.vmem %s1, 4294967266
  %8 = vst.msk [vmem:[%s7] ss:$8 sm:$0x30] %vm3, %v2
  %s9 = scalar_lea.vmem %s1, 4294967251
  %10 = vst.msk [vmem:[%s9] ss:$8 sm:$0xc0] %vm3, %v2
  %s11 = scalar_lea.vmem %s0, 32
  %v12 = vld [vmem:[%s11] ss:$4 sm:$0xff]
  %vm13 = vcmask 261120
  %s14 = scalar_lea.vmem %s1, 4
  %15 = vst.msk [vmem:[%s14] ss:$8 sm:$0x3] %vm13, %v12
  %s16 = scalar_lea.vmem %s1, 4294967285
  %17 = vst.msk [vmem:[%s16] ss:$8 sm:$0xc] %vm13, %v12
  %s18 = scalar_lea.vmem %s1, 4294967270
  %19 = vst.msk [vmem:[%s18] ss:$8 sm:$0x30] %vm13, %v12
  %s20 = scalar_lea.vmem %s1, 4294967255
  %21 = vst.msk [vmem:[%s20] ss:$8 sm:$0xc0] %vm13, %v12
  %s22 = scalar_lea.vmem %s0, 64
  %s23 = smov 3
  %v24 = vld [vmem:[%s22] ss:$4 sm:%s23]
  %vm25 = vcmask 261120
  %s26 = scalar_lea.vmem %s1, 16
  %27 = vst.msk [vmem:[%s26] ss:$8 sm:$0x3] %vm25, %v24
  %s28 = scalar_lea.vmem %s0, 3
  %v29 = vld [vmem:[%s28] ss:$8 sm:$0xf]
  %s30 = scalar_lea.vmem %s0, 3
  %v31 = vld [vmem:[%s30] ss:$8 sm:$0xf0]
  %vm32 = vcmask 1047556
  %v33 = vsel %vm32, %v31, %v29
  %34 = vrot.lane.b32.xlu0 %v33, 96
  %v35 = vpop.permute.xlu0 %34
  %vm36 = vcmask 1048320
  %37 = vst.msk [vmem:[%s1] sm:$0xff] %vm36, %v35
  %s38 = scalar_lea.vmem %s0, 7
  %v39 = vld [vmem:[%s38] ss:$8 sm:$0xf]
  %s40 = scalar_lea.vmem %s0, 7
  %v41 = vld [vmem:[%s40] ss:$8 sm:$0xf0]
  %vm42 = vcmask 1047556
  %v43 = vsel %vm42, %v41, %v39
  %44 = vrot.lane.b32.xlu0 %v43, 96
  %v45 = vpop.permute.xlu0 %44
  %vm46 = vcmask 1048320
  %s47 = scalar_lea.vmem %s1, 8
  %48 = vst.msk [vmem:[%s47] sm:$0xff] %vm46, %v45
  %s49 = scalar_lea.vmem %s0, 67
  %s50 = smov 3
  %v51 = vld [vmem:[%s49] ss:$4 sm:%s50]
  %52 = vrot.lane.b32.xlu0 %v51, 96
  %v53 = vpop.permute.xlu0 %52
  %vm54 = vcmask 1048320
  %s55 = scalar_lea.vmem %s1, 16
  %56 = vst.msk [vmem:[%s55] ss:$8 sm:$0x3] %vm54, %v53
  %s57 = scalar_lea.vmem %s0, 2
  %v58 = vld [vmem:[%s57] ss:$8 sm:$0xf]
  %s59 = scalar_lea.vmem %s0, 2
  %v60 = vld [vmem:[%s59] ss:$8 sm:$0xf0]
  %vm61 = vcmask 1047556
  %v62 = vsel %vm61, %v60, %v58
  %63 = vrot.lane.b32.xlu0 %v62, 64
  %v64 = vpop.permute.xlu0 %63
  %vm65 = vcmask 785920
  %66 = vst.msk [vmem:[%s1] sm:$0xff] %vm65, %v64
  %s67 = scalar_lea.vmem %s0, 6
  %v68 = vld [vmem:[%s67] ss:$8 sm:$0xf]
  %s69 = scalar_lea.vmem %s0, 6
  %v70 = vld [vmem:[%s69] ss:$8 sm:$0xf0]
  %vm71 = vcmask 1047556
  %v72 = vsel %vm71, %v70, %v68
  %73 = vrot.lane.b32.xlu0 %v72, 64
  %v74 = vpop.permute.xlu0 %73
  %vm75 = vcmask 785920
  %s76 = scalar_lea.vmem %s1, 8
  %77 = vst.msk [vmem:[%s76] sm:$0xff] %vm75, %v74
  %s78 = scalar_lea.vmem %s0, 66
  %s79 = smov 3
  %v80 = vld [vmem:[%s78] ss:$4 sm:%s79]
  %81 = vrot.lane.b32.xlu0 %v80, 64
  %v82 = vpop.permute.xlu0 %81
  %vm83 = vcmask 785920
  %s84 = scalar_lea.vmem %s1, 16
  %85 = vst.msk [vmem:[%s84] ss:$8 sm:$0x3] %vm83, %v82
  %s86 = scalar_lea.vmem %s0, 1
  %v87 = vld [vmem:[%s86] ss:$8 sm:$0xf]
  %s88 = scalar_lea.vmem %s0, 1
  %v89 = vld [vmem:[%s88] ss:$8 sm:$0xf0]
  %vm90 = vcmask 1047556
  %v91 = vsel %vm90, %v89, %v87
  %92 = vrot.lane.b32.xlu0 %v91, 32
  %v93 = vpop.permute.xlu0 %92
  %vm94 = vcmask 523520
  %95 = vst.msk [vmem:[%s1] sm:$0xff] %vm94, %v93
  %s96 = scalar_lea.vmem %s0, 5
  %v97 = vld [vmem:[%s96] ss:$8 sm:$0xf]
  %s98 = scalar_lea.vmem %s0, 5
  %v99 = vld [vmem:[%s98] ss:$8 sm:$0xf0]
  %vm100 = vcmask 1047556
  %v101 = vsel %vm100, %v99, %v97
  %102 = vrot.lane.b32.xlu0 %v101, 32
  %v103 = vpop.permute.xlu0 %102
  %vm104 = vcmask 523520
  %s105 = scalar_lea.vmem %s1, 8
  %106 = vst.msk [vmem:[%s105] sm:$0xff] %vm104, %v103
  %s107 = scalar_lea.vmem %s0, 65
  %s108 = smov 3
  %v109 = vld [vmem:[%s107] ss:$4 sm:%s108]
  %110 = vrot.lane.b32.xlu0 %v109, 32
  %v111 = vpop.permute.xlu0 %110
  %vm112 = vcmask 523520
  %s113 = scalar_lea.vmem %s1, 16
  %114 = vst.msk [vmem:[%s113] ss:$8 sm:$0x3] %vm112, %v111

// kernel: bottleneck_forward.1
$region0: #{bottleneck_forward.1}
  #allocation0 [shape = 'u32[]', space=smem, size = 0x4, offset = 0x4, fixed_abs, tag = 'smem constant byte address 0x4 - core index']
  #allocation1 [shape = 'u32[72,128]{1,0:T(1,128)}', space=vmem, size = 0x9000, scoped, tag = 'internal scratch']
  %s0 = inlined_call_operand.vmem [shape: f32[16,512], index: 0, kind: input, shape index: {}]
  %s1 = inlined_call_operand.vmem [shape: f32[512,256], index: 1, kind: input, shape index: {}]
  %s2 = inlined_call_operand.vmem [shape: f32[9,256], index: 2, kind: input, shape index: {}]
  %s3 = inlined_call_operand.vmem [shape: f32[256,512], index: 3, kind: input, shape index: {}]
  %s4 = inlined_call_operand.vmem [shape: f32[16,16], index: 4, kind: input, shape index: {}]
  %s5 = inlined_call_operand.vmem [shape: f32[16,16], index: 5, kind: input, shape index: {}]
  %s6 = inlined_call_operand.vmem [shape: f32[1,256], index: 6, kind: input, shape index: {}]
  %s7 = inlined_call_operand.vmem [shape: f32[1,256], index: 7, kind: input, shape index: {}]
  %s8 = inlined_call_operand.vmem [shape: f32[1,256], index: 8, kind: input, shape index: {}]
  %s9 = inlined_call_operand.vmem [shape: f32[1,256], index: 9, kind: input, shape index: {}]
  %s10 = inlined_call_operand.vmem [shape: f32[1,512], index: 10, kind: input, shape index: {}]
  %s11 = inlined_call_operand.vmem [shape: f32[1,512], index: 11, kind: input, shape index: {}]
  %s12 = inlined_call_operand.vmem [shape: f32[16,512], index: 12, kind: output, shape index: {}]
  %s13 = sld [smem:[#allocation0]]
  $region58: #{bottleneck_forward.1} parent=0
    _
  %s15 = ssub.s32 1, %s13
  %s16 = scalar_select 0, %s15, %s13
  // Predicated region
  $region2: #{bottleneck_forward.1} parent=0 // pred_check
    _
  $region3: #{bottleneck_forward.1} parent=0 // pred_check_branch
    %18 = sbr.rel (0) target = $region5
  $region4: #{bottleneck_forward.1} parent=0 // pred_region
    _
  $region5: #{bottleneck_forward.1} parent=0 // pred_fallthru
    _
  // Predicated region
  $region6: #{bottleneck_forward.1} parent=0 // pred_check
    _
  $region7: #{bottleneck_forward.1} parent=0 // pred_check_branch
    %20 = sbr.rel (0) target = $region9
  $region8: #{bottleneck_forward.1} parent=0 // pred_region
    _
  $region9: #{bottleneck_forward.1} parent=0 // pred_fallthru
    _
  // Predicated region
  $region10: #{bottleneck_forward.1} parent=0 // pred_check
    _
  $region11: #{bottleneck_forward.1} parent=0 // pred_check_branch
    %22 = sbr.rel (0) target = $region13
  $region12: #{bottleneck_forward.1} parent=0 // pred_region
    _
  $region13: #{bottleneck_forward.1} parent=0 // pred_fallthru
    _
  // Predicated region
  $region14: #{bottleneck_forward.1} parent=0 // pred_check
    _
  $region15: #{bottleneck_forward.1} parent=0 // pred_check_branch
    %24 = sbr.rel (0) target = $region17
  $region16: #{bottleneck_forward.1} parent=0 // pred_region
    _
  $region17: #{bottleneck_forward.1} parent=0 // pred_fallthru
    _
  // Predicated region
  $region18: #{bottleneck_forward.1} parent=0 // pred_check
    _
  $region19: #{bottleneck_forward.1} parent=0 // pred_check_branch
    %26 = sbr.rel (0) target = $region21
  $region20: #{bottleneck_forward.1} parent=0 // pred_region
    _
  $region21: #{bottleneck_forward.1} parent=0 // pred_fallthru
    _
  // Predicated region
  $region22: #{bottleneck_forward.1} parent=0 // pred_check
    _
  $region23: #{bottleneck_forward.1} parent=0 // pred_check_branch
    %28 = sbr.rel (0) target = $region25
  $region24: #{bottleneck_forward.1} parent=0 // pred_region
    _
  $region25: #{bottleneck_forward.1} parent=0 // pred_fallthru
    _
  // Predicated region
  $region26: #{bottleneck_forward.1} parent=0 // pred_check
    _
  $region27: #{bottleneck_forward.1} parent=0 // pred_check_branch
    %30 = sbr.rel (0) target = $region29
  $region28: #{bottleneck_forward.1} parent=0 // pred_region
    _
  $region29: #{bottleneck_forward.1} parent=0 // pred_fallthru
    _
  // Predicated region
  $region30: #{bottleneck_forward.1} parent=0 // pred_check
    _
  $region31: #{bottleneck_forward.1} parent=0 // pred_check_branch
    %32 = sbr.rel (0) target = $region33
  $region32: #{bottleneck_forward.1} parent=0 // pred_region
    _
  $region33: #{bottleneck_forward.1} parent=0 // pred_fallthru
    _
  // Predicated region
  $region34: #{bottleneck_forward.1} parent=0 // pred_check
    _
  $region35: #{bottleneck_forward.1} parent=0 // pred_check_branch
    %34 = sbr.rel (0) target = $region37
  $region36: #{bottleneck_forward.1} parent=0 // pred_region
    _
  $region37: #{bottleneck_forward.1} parent=0 // pred_fallthru
    _
  // Predicated region
  $region38: #{bottleneck_forward.1} parent=0 // pred_check
    _
  $region39: #{bottleneck_forward.1} parent=0 // pred_check_branch
    %36 = sbr.rel (0) target = $region41
  $region40: #{bottleneck_forward.1} parent=0 // pred_region
    _
  $region41: #{bottleneck_forward.1} parent=0 // pred_fallthru
    _
  // Predicated region
  $region42: #{bottleneck_forward.1} parent=0 // pred_check
    _
  $region43: #{bottleneck_forward.1} parent=0 // pred_check_branch
    %38 = sbr.rel (0) target = $region45
  $region44: #{bottleneck_forward.1} parent=0 // pred_region
    _
  $region45: #{bottleneck_forward.1} parent=0 // pred_fallthru
    _
  // Predicated region
  $region46: #{bottleneck_forward.1} parent=0 // pred_check
    _
  $region47: #{bottleneck_forward.1} parent=0 // pred_check_branch
    %40 = sbr.rel (0) target = $region49
  $region48: #{bottleneck_forward.1} parent=0 // pred_region
    _
  $region49: #{bottleneck_forward.1} parent=0 // pred_fallthru
    _
  %v41 = vld [vmem:[%s0] sm:$0xff]
  %v42 = vld [vmem:[%s0 + $0x8] sm:$0xff]
  %v43 = vld [vmem:[%s0 + $0x10] sm:$0xff]
  %v44 = vld [vmem:[%s0 + $0x18] sm:$0xff]
  %v45 = vld [vmem:[%s0 + $0x20] sm:$0xff]
  %v46 = vld [vmem:[%s0 + $0x28] sm:$0xff]
  %v47 = vld [vmem:[%s0 + $0x30] sm:$0xff]
  %v48 = vld [vmem:[%s0 + $0x38] sm:$0xff]
  %v49 = vld [vmem:[%s1] sm:$0xff]
  %v50 = vld [vmem:[%s1 + $0x8] sm:$0xff]
  %v51 = vld [vmem:[%s1 + $0x10] sm:$0xff]
  %v52 = vld [vmem:[%s1 + $0x18] sm:$0xff]
  %v53 = vld [vmem:[%s1 + $0x20] sm:$0xff]
  %v54 = vld [vmem:[%s1 + $0x28] sm:$0xff]
  %v55 = vld [vmem:[%s1 + $0x30] sm:$0xff]
  %v56 = vld [vmem:[%s1 + $0x38] sm:$0xff]
  %v57 = vld [vmem:[%s1 + $0x40] sm:$0xff]
  %v58 = vld [vmem:[%s1 + $0x48] sm:$0xff]
  %v59 = vld [vmem:[%s1 + $0x50] sm:$0xff]
  %v60 = vld [vmem:[%s1 + $0x58] sm:$0xff]
  %v61 = vld [vmem:[%s1 + $0x60] sm:$0xff]
  %v62 = vld [vmem:[%s1 + $0x68] sm:$0xff]
  %v63 = vld [vmem:[%s1 + $0x70] sm:$0xff]
  %v64 = vld [vmem:[%s1 + $0x78] sm:$0xff]
  %v65 = vld [vmem:[%s1 + $0x80] sm:$0xff]
  %v66 = vld [vmem:[%s1 + $0x88] sm:$0xff]
  %v67 = vld [vmem:[%s1 + $0x90] sm:$0xff]
  %v68 = vld [vmem:[%s1 + $0x98] sm:$0xff]
  %v69 = vld [vmem:[%s1 + $0xa0] sm:$0xff]
  %v70 = vld [vmem:[%s1 + $0xa8] sm:$0xff]
  %v71 = vld [vmem:[%s1 + $0xb0] sm:$0xff]
  %v72 = vld [vmem:[%s1 + $0xb8] sm:$0xff]
  %v73 = vld [vmem:[%s1 + $0xc0] sm:$0xff]
  %v74 = vld [vmem:[%s1 + $0xc8] sm:$0xff]
  %v75 = vld [vmem:[%s1 + $0xd0] sm:$0xff]
  %v76 = vld [vmem:[%s1 + $0xd8] sm:$0xff]
  %v77 = vld [vmem:[%s1 + $0xe0] sm:$0xff]
  %v78 = vld [vmem:[%s1 + $0xe8] sm:$0xff]
  %v79 = vld [vmem:[%s1 + $0xf0] sm:$0xff]
  %v80 = vld [vmem:[%s1 + $0xf8] sm:$0xff]
  %v81 = vld [vmem:[%s1 + $0x100] sm:$0xff]
  %v82 = vld [vmem:[%s1 + $0x108] sm:$0xff]
  %v83 = vld [vmem:[%s1 + $0x110] sm:$0xff]
  %v84 = vld [vmem:[%s1 + $0x118] sm:$0xff]
  %v85 = vld [vmem:[%s1 + $0x120] sm:$0xff]
  %v86 = vld [vmem:[%s1 + $0x128] sm:$0xff]
  %v87 = vld [vmem:[%s1 + $0x130] sm:$0xff]
  %v88 = vld [vmem:[%s1 + $0x138] sm:$0xff]
  %v89 = vld [vmem:[%s1 + $0x140] sm:$0xff]
  %v90 = vld [vmem:[%s1 + $0x148] sm:$0xff]
  %v91 = vld [vmem:[%s1 + $0x150] sm:$0xff]
  %v92 = vld [vmem:[%s1 + $0x158] sm:$0xff]
  %v93 = vld [vmem:[%s1 + $0x160] sm:$0xff]
  %v94 = vld [vmem:[%s1 + $0x168] sm:$0xff]
  %v95 = vld [vmem:[%s1 + $0x170] sm:$0xff]
  %v96 = vld [vmem:[%s1 + $0x178] sm:$0xff]
  %v97 = vld [vmem:[%s1 + $0x180] sm:$0xff]
  %v98 = vld [vmem:[%s1 + $0x188] sm:$0xff]
  %v99 = vld [vmem:[%s1 + $0x190] sm:$0xff]
  %v100 = vld [vmem:[%s1 + $0x198] sm:$0xff]
  %v101 = vld [vmem:[%s1 + $0x1a0] sm:$0xff]
  %v102 = vld [vmem:[%s1 + $0x1a8] sm:$0xff]
  %v103 = vld [vmem:[%s1 + $0x1b0] sm:$0xff]
  %v104 = vld [vmem:[%s1 + $0x1b8] sm:$0xff]
  %v105 = vld [vmem:[%s1 + $0x1c0] sm:$0xff]
  %v106 = vld [vmem:[%s1 + $0x1c8] sm:$0xff]
  %v107 = vld [vmem:[%s1 + $0x1d0] sm:$0xff]
  %v108 = vld [vmem:[%s1 + $0x1d8] sm:$0xff]
  %v109 = vld [vmem:[%s1 + $0x1e0] sm:$0xff]
  %v110 = vld [vmem:[%s1 + $0x1e8] sm:$0xff]
  %v111 = vld [vmem:[%s1 + $0x1f0] sm:$0xff]
  %v112 = vld [vmem:[%s1 + $0x1f8] sm:$0xff]
  %v113 = vld [vmem:[%s1 + $0x200] sm:$0xff]
  %v114 = vld [vmem:[%s1 + $0x208] sm:$0xff]
  %v115 = vld [vmem:[%s1 + $0x210] sm:$0xff]
  %v116 = vld [vmem:[%s1 + $0x218] sm:$0xff]
  %v117 = vld [vmem:[%s1 + $0x220] sm:$0xff]
  %v118 = vld [vmem:[%s1 + $0x228] sm:$0xff]
  %v119 = vld [vmem:[%s1 + $0x230] sm:$0xff]
  %v120 = vld [vmem:[%s1 + $0x238] sm:$0xff]
  %v121 = vld [vmem:[%s1 + $0x240] sm:$0xff]
  %v122 = vld [vmem:[%s1 + $0x248] sm:$0xff]
  %v123 = vld [vmem:[%s1 + $0x250] sm:$0xff]
  %v124 = vld [vmem:[%s1 + $0x258] sm:$0xff]
  %v125 = vld [vmem:[%s1 + $0x260] sm:$0xff]
  %v126 = vld [vmem:[%s1 + $0x268] sm:$0xff]
  %v127 = vld [vmem:[%s1 + $0x270] sm:$0xff]
  %v128 = vld [vmem:[%s1 + $0x278] sm:$0xff]
  %v129 = vld [vmem:[%s1 + $0x280] sm:$0xff]
  %v130 = vld [vmem:[%s1 + $0x288] sm:$0xff]
  %v131 = vld [vmem:[%s1 + $0x290] sm:$0xff]
  %v132 = vld [vmem:[%s1 + $0x298] sm:$0xff]
  %v133 = vld [vmem:[%s1 + $0x2a0] sm:$0xff]
  %v134 = vld [vmem:[%s1 + $0x2a8] sm:$0xff]
  %v135 = vld [vmem:[%s1 + $0x2b0] sm:$0xff]
  %v136 = vld [vmem:[%s1 + $0x2b8] sm:$0xff]
  %v137 = vld [vmem:[%s1 + $0x2c0] sm:$0xff]
  %v138 = vld [vmem:[%s1 + $0x2c8] sm:$0xff]
  %v139 = vld [vmem:[%s1 + $0x2d0] sm:$0xff]
  %v140 = vld [vmem:[%s1 + $0x2d8] sm:$0xff]
  %v141 = vld [vmem:[%s1 + $0x2e0] sm:$0xff]
  %v142 = vld [vmem:[%s1 + $0x2e8] sm:$0xff]
  %v143 = vld [vmem:[%s1 + $0x2f0] sm:$0xff]
  %v144 = vld [vmem:[%s1 + $0x2f8] sm:$0xff]
  %v145 = vld [vmem:[%s1 + $0x300] sm:$0xff]
  %v146 = vld [vmem:[%s1 + $0x308] sm:$0xff]
  %v147 = vld [vmem:[%s1 + $0x310] sm:$0xff]
  %v148 = vld [vmem:[%s1 + $0x318] sm:$0xff]
  %v149 = vld [vmem:[%s1 + $0x320] sm:$0xff]
  %v150 = vld [vmem:[%s1 + $0x328] sm:$0xff]
  %v151 = vld [vmem:[%s1 + $0x330] sm:$0xff]
  %v152 = vld [vmem:[%s1 + $0x338] sm:$0xff]
  %v153 = vld [vmem:[%s1 + $0x340] sm:$0xff]
  %v154 = vld [vmem:[%s1 + $0x348] sm:$0xff]
  %v155 = vld [vmem:[%s1 + $0x350] sm:$0xff]
  %v156 = vld [vmem:[%s1 + $0x358] sm:$0xff]
  %v157 = vld [vmem:[%s1 + $0x360] sm:$0xff]
  %v158 = vld [vmem:[%s1 + $0x368] sm:$0xff]
  %v159 = vld [vmem:[%s1 + $0x370] sm:$0xff]
  %v160 = vld [vmem:[%s1 + $0x378] sm:$0xff]
  %v161 = vld [vmem:[%s1 + $0x380] sm:$0xff]
  %v162 = vld [vmem:[%s1 + $0x388] sm:$0xff]
  %v163 = vld [vmem:[%s1 + $0x390] sm:$0xff]
  %v164 = vld [vmem:[%s1 + $0x398] sm:$0xff]
  %v165 = vld [vmem:[%s1 + $0x3a0] sm:$0xff]
  %v166 = vld [vmem:[%s1 + $0x3a8] sm:$0xff]
  %v167 = vld [vmem:[%s1 + $0x3b0] sm:$0xff]
  %v168 = vld [vmem:[%s1 + $0x3b8] sm:$0xff]
  %v169 = vld [vmem:[%s1 + $0x3c0] sm:$0xff]
  %v170 = vld [vmem:[%s1 + $0x3c8] sm:$0xff]
  %v171 = vld [vmem:[%s1 + $0x3d0] sm:$0xff]
  %v172 = vld [vmem:[%s1 + $0x3d8] sm:$0xff]
  %v173 = vld [vmem:[%s1 + $0x3e0] sm:$0xff]
  %v174 = vld [vmem:[%s1 + $0x3e8] sm:$0xff]
  %v175 = vld [vmem:[%s1 + $0x3f0] sm:$0xff]
  %v176 = vld [vmem:[%s1 + $0x3f8] sm:$0xff]
  %177 = vmatpush.msra.mxu0 %v79
  %178 = vmatpush.msra.mxu0 %v77
  %179 = vmatpush.msra.mxu0 %v75
  %180 = vmatpush.msra.mxu0 %v73
  %181 = vmatpush.msra.mxu0 %v71
  %182 = vmatpush.msra.mxu0 %v69
  %183 = vmatpush.msra.mxu0 %v67
  %184 = vmatpush.msra.mxu0 %v65
  %185 = vmatpush.msra.mxu0 %v63
  %186 = vmatpush.msra.mxu0 %v61
  %187 = vmatpush.msra.mxu0 %v59
  %188 = vmatpush.msra.mxu0 %v57
  %189 = vmatpush.msra.mxu0 %v55
  %190 = vmatpush.msra.mxu0 %v53
  %191 = vmatpush.msra.mxu0 %v51
  %192 = vmatpush.msra.mxu0 %v49
  %193 = vmatmul.f32.gmra.mxu0 %v41
  %v194 = vpop.f32.mrf.mxu0
  %v195 = vadd.f32 0.0, %v194
  %196 = vmatmul.f32.gmra.mxu0 %v45
  %v197 = vpop.f32.mrf.mxu0
  %v198 = vadd.f32 0.0, %v197
  %199 = vdwg.mxu0
  %200 = vmatpush.msra.mxu0 %v111
  %201 = vmatpush.msra.mxu0 %v109
  %202 = vmatpush.msra.mxu0 %v107
  %203 = vmatpush.msra.mxu0 %v105
  %204 = vmatpush.msra.mxu0 %v103
  %205 = vmatpush.msra.mxu0 %v101
  %206 = vmatpush.msra.mxu0 %v99
  %207 = vmatpush.msra.mxu0 %v97
  %208 = vmatpush.msra.mxu0 %v95
  %209 = vmatpush.msra.mxu0 %v93
  %210 = vmatpush.msra.mxu0 %v91
  %211 = vmatpush.msra.mxu0 %v89
  %212 = vmatpush.msra.mxu0 %v87
  %213 = vmatpush.msra.mxu0 %v85
  %214 = vmatpush.msra.mxu0 %v83
  %215 = vmatpush.msra.mxu0 %v81
  %216 = vmatmul.f32.gmra.mxu0 %v42
  %v217 = vpop.f32.mrf.mxu0
  %v218 = vadd.f32 %v195, %v217
  %219 = vmatmul.f32.gmra.mxu0 %v46
  %v220 = vpop.f32.mrf.mxu0
  %v221 = vadd.f32 %v198, %v220
  %222 = vdwg.mxu0
  %223 = vmatpush.msra.mxu0 %v143
  %224 = vmatpush.msra.mxu0 %v141
  %225 = vmatpush.msra.mxu0 %v139
  %226 = vmatpush.msra.mxu0 %v137
  %227 = vmatpush.msra.mxu0 %v135
  %228 = vmatpush.msra.mxu0 %v133
  %229 = vmatpush.msra.mxu0 %v131
  %230 = vmatpush.msra.mxu0 %v129
  %231 = vmatpush.msra.mxu0 %v127
  %232 = vmatpush.msra.mxu0 %v125
  %233 = vmatpush.msra.mxu0 %v123
  %234 = vmatpush.msra.mxu0 %v121
  %235 = vmatpush.msra.mxu0 %v119
  %236 = vmatpush.msra.mxu0 %v117
  %237 = vmatpush.msra.mxu0 %v115
  %238 = vmatpush.msra.mxu0 %v113
  %239 = vmatmul.f32.gmra.mxu0 %v43
  %v240 = vpop.f32.mrf.mxu0
  %v241 = vadd.f32 %v218, %v240
  %242 = vmatmul.f32.gmra.mxu0 %v47
  %v243 = vpop.f32.mrf.mxu0
  %v244 = vadd.f32 %v221, %v243
  %245 = vdwg.mxu0
  %246 = vmatpush.msra.mxu0 %v175
  %247 = vmatpush.msra.mxu0 %v173
  %248 = vmatpush.msra.mxu0 %v171
  %249 = vmatpush.msra.mxu0 %v169
  %250 = vmatpush.msra.mxu0 %v167
  %251 = vmatpush.msra.mxu0 %v165
  %252 = vmatpush.msra.mxu0 %v163
  %253 = vmatpush.msra.mxu0 %v161
  %254 = vmatpush.msra.mxu0 %v159
  %255 = vmatpush.msra.mxu0 %v157
  %256 = vmatpush.msra.mxu0 %v155
  %257 = vmatpush.msra.mxu0 %v153
  %258 = vmatpush.msra.mxu0 %v151
  %259 = vmatpush.msra.mxu0 %v149
  %260 = vmatpush.msra.mxu0 %v147
  %261 = vmatpush.msra.mxu0 %v145
  %262 = vmatmul.f32.gmra.mxu0 %v44
  %v263 = vpop.f32.mrf.mxu0
  %v264 = vadd.f32 %v241, %v263
  %265 = vmatmul.f32.gmra.mxu0 %v48
  %v266 = vpop.f32.mrf.mxu0
  %v267 = vadd.f32 %v244, %v266
  %268 = vdwg.mxu0
  %269 = vmatpush.msra.mxu0 %v80
  %270 = vmatpush.msra.mxu0 %v78
  %271 = vmatpush.msra.mxu0 %v76
  %272 = vmatpush.msra.mxu0 %v74
  %273 = vmatpush.msra.mxu0 %v72
  %274 = vmatpush.msra.mxu0 %v70
  %275 = vmatpush.msra.mxu0 %v68
  %276 = vmatpush.msra.mxu0 %v66
  %277 = vmatpush.msra.mxu0 %v64
  %278 = vmatpush.msra.mxu0 %v62
  %279 = vmatpush.msra.mxu0 %v60
  %280 = vmatpush.msra.mxu0 %v58
  %281 = vmatpush.msra.mxu0 %v56
  %282 = vmatpush.msra.mxu0 %v54
  %283 = vmatpush.msra.mxu0 %v52
  %284 = vmatpush.msra.mxu0 %v50
  %285 = vmatmul.f32.gmra.mxu0 %v41
  %v286 = vpop.f32.mrf.mxu0
  %v287 = vadd.f32 0.0, %v286
  %288 = vmatmul.f32.gmra.mxu0 %v45
  %v289 = vpop.f32.mrf.mxu0
  %v290 = vadd.f32 0.0, %v289
  %291 = vdwg.mxu0
  %292 = vmatpush.msra.mxu0 %v112
  %293 = vmatpush.msra.mxu0 %v110
  %294 = vmatpush.msra.mxu0 %v108
  %295 = vmatpush.msra.mxu0 %v106
  %296 = vmatpush.msra.mxu0 %v104
  %297 = vmatpush.msra.mxu0 %v102
  %298 = vmatpush.msra.mxu0 %v100
  %299 = vmatpush.msra.mxu0 %v98
  %300 = vmatpush.msra.mxu0 %v96
  %301 = vmatpush.msra.mxu0 %v94
  %302 = vmatpush.msra.mxu0 %v92
  %303 = vmatpush.msra.mxu0 %v90
  %304 = vmatpush.msra.mxu0 %v88
  %305 = vmatpush.msra.mxu0 %v86
  %306 = vmatpush.msra.mxu0 %v84
  %307 = vmatpush.msra.mxu0 %v82
  %308 = vmatmul.f32.gmra.mxu0 %v42
  %v309 = vpop.f32.mrf.mxu0
  %v310 = vadd.f32 %v287, %v309
  %311 = vmatmul.f32.gmra.mxu0 %v46
  %v312 = vpop.f32.mrf.mxu0
  %v313 = vadd.f32 %v290, %v312
  %314 = vdwg.mxu0
  %315 = vmatpush.msra.mxu0 %v144
  %316 = vmatpush.msra.mxu0 %v142
  %317 = vmatpush.msra.mxu0 %v140
  %318 = vmatpush.msra.mxu0 %v138
  %319 = vmatpush.msra.mxu0 %v136
  %320 = vmatpush.msra.mxu0 %v134
  %321 = vmatpush.msra.mxu0 %v132
  %322 = vmatpush.msra.mxu0 %v130
  %323 = vmatpush.msra.mxu0 %v128
  %324 = vmatpush.msra.mxu0 %v126
  %325 = vmatpush.msra.mxu0 %v124
  %326 = vmatpush.msra.mxu0 %v122
  %327 = vmatpush.msra.mxu0 %v120
  %328 = vmatpush.msra.mxu0 %v118
  %329 = vmatpush.msra.mxu0 %v116
  %330 = vmatpush.msra.mxu0 %v114
  %331 = vmatmul.f32.gmra.mxu0 %v43
  %v332 = vpop.f32.mrf.mxu0
  %v333 = vadd.f32 %v310, %v332
  %334 = vmatmul.f32.gmra.mxu0 %v47
  %v335 = vpop.f32.mrf.mxu0
  %v336 = vadd.f32 %v313, %v335
  %337 = vdwg.mxu0
  %338 = vmatpush.msra.mxu0 %v176
  %339 = vmatpush.msra.mxu0 %v174
  %340 = vmatpush.msra.mxu0 %v172
  %341 = vmatpush.msra.mxu0 %v170
  %342 = vmatpush.msra.mxu0 %v168
  %343 = vmatpush.msra.mxu0 %v166
  %344 = vmatpush.msra.mxu0 %v164
  %345 = vmatpush.msra.mxu0 %v162
  %346 = vmatpush.msra.mxu0 %v160
  %347 = vmatpush.msra.mxu0 %v158
  %348 = vmatpush.msra.mxu0 %v156
  %349 = vmatpush.msra.mxu0 %v154
  %350 = vmatpush.msra.mxu0 %v152
  %351 = vmatpush.msra.mxu0 %v150
  %352 = vmatpush.msra.mxu0 %v148
  %353 = vmatpush.msra.mxu0 %v146
  %354 = vmatmul.f32.gmra.mxu0 %v44
  %v355 = vpop.f32.mrf.mxu0
  %v356 = vadd.f32 %v333, %v355
  %357 = vmatmul.f32.gmra.mxu0 %v48
  %v358 = vpop.f32.mrf.mxu0
  %v359 = vadd.f32 %v336, %v358
  %360 = vdwg.mxu0
  %v361 = vld [vmem:[%s6] sm:$0x3]
  %v362 = vld [vmem:[%s7] sm:$0x3]
  %v363 = vadd.f32 %v264, %v267
  %v364 = vrot.slane %v363, 4
  %v365 = vadd.f32 %v363, %v364
  %v366 = vrot.slane %v365, 2
  %v367 = vadd.f32 %v365, %v366
  %v368 = vrot.slane %v367, 1
  %v369 = vadd.f32 %v367, %v368
  %v370 = vadd.f32 %v356, %v359
  %v371 = vrot.slane %v370, 4
  %v372 = vadd.f32 %v370, %v371
  %v373 = vrot.slane %v372, 2
  %v374 = vadd.f32 %v372, %v373
  %v375 = vrot.slane %v374, 1
  %v376 = vadd.f32 %v374, %v375
  %377 = vrot.lane.b32.xlu0 %v369, 32
  %v378 = vpop.permute.xlu0 %377
  %379 = vrot.lane.b32.xlu0 %v376, 32
  %v380 = vpop.permute.xlu0 %379
  %v381 = vlaneseq
  %v382 = vand.u32 %v381, 127
  %vm383 = vcmp.lt.s32.totalorder %v382, 32
  %v384 = vsel %vm383, %v378, %v380
  %v385 = vsel %vm383, %v380, %v378
  %v386 = vadd.f32 %v369, %v385
  %v387 = vadd.f32 %v376, %v384
  %388 = vrot.lane.b32.xlu0 %v386, 64
  %v389 = vpop.permute.xlu0 %388
  %390 = vrot.lane.b32.xlu0 %v387, 64
  %v391 = vpop.permute.xlu0 %390
  %vm392 = vcmp.lt.s32.totalorder %v382, 64
  %v393 = vsel %vm392, %v389, %v391
  %v394 = vsel %vm392, %v391, %v389
  %v395 = vadd.f32 %v386, %v394
  %v396 = vadd.f32 %v387, %v393
  %v397 = vadd.f32 %v395, %v396
  %v398 = vmul.f32 %v264, %v264
  %v399 = vmul.f32 %v356, %v356
  %v400 = vmul.f32 %v267, %v267
  %v401 = vmul.f32 %v359, %v359
  %v402 = vadd.f32 %v398, %v400
  %v403 = vrot.slane %v402, 4
  %v404 = vadd.f32 %v402, %v403
  %v405 = vrot.slane %v404, 2
  %v406 = vadd.f32 %v404, %v405
  %v407 = vrot.slane %v406, 1
  %v408 = vadd.f32 %v406, %v407
  %v409 = vadd.f32 %v399, %v401
  %v410 = vrot.slane %v409, 4
  %v411 = vadd.f32 %v409, %v410
  %v412 = vrot.slane %v411, 2
  %v413 = vadd.f32 %v411, %v412
  %v414 = vrot.slane %v413, 1
  %v415 = vadd.f32 %v413, %v414
  %416 = vrot.lane.b32.xlu0 %v408, 32
  %v417 = vpop.permute.xlu0 %416
  %418 = vrot.lane.b32.xlu0 %v415, 32
  %v419 = vpop.permute.xlu0 %418
  %v420 = vsel %vm383, %v417, %v419
  %v421 = vsel %vm383, %v419, %v417
  %v422 = vadd.f32 %v408, %v421
  %v423 = vadd.f32 %v415, %v420
  %424 = vrot.lane.b32.xlu0 %v422, 64
  %v425 = vpop.permute.xlu0 %424
  %426 = vrot.lane.b32.xlu0 %v423, 64
  %v427 = vpop.permute.xlu0 %426
  %v428 = vsel %vm392, %v425, %v427
  %v429 = vsel %vm392, %v427, %v425
  %v430 = vadd.f32 %v422, %v429
  %v431 = vadd.f32 %v423, %v428
  %v432 = vadd.f32 %v430, %v431
  %v433 = vmul.f32 %v397, 0.0078125
  %v434 = vmul.f32 %v432, 0.0078125
  %v435 = vmul.f32 %v433, %v433
  %v436 = vsub.f32 %v434, %v435
  %v437 = vadd.f32 %v436, 1e-05
  %v438 = vrsqrt.pop %v437
  %v439 = vmul.f32 %v438, %v437
  %v440 = vmul.f32 %v439, %v438
  %v441 = vmul.f32 0.5, %v440
  %v442 = vsub.f32 1.5, %v441
  %v443 = vmul.f32 %v438, %v442
  %vm444 = vweird.f32 %v437
  %vm445 = vweird.f32 %v438
  %vm446 = vmor %vm444, %vm445
  %v447 = vsel %vm446, %v438, %v443
  %v449 = vrot.slane %v447, 7
  %vm450 = vcmask 1040384
  %v451 = vsel %vm450, %v447, %v449
  %v453 = vmul.f32 %v361, %v451
  %v455 = vperm.slane %v453, 0
  %v456 = vperm.slane %v453, 1
  %v459 = vmul.f32 %v433, %v455
  %v460 = vmul.f32 %v433, %v456
  %v463 = vrot.slane %v460, 7
  %v464 = vsel %vm450, %v459, %v463
  %v466 = vsub.f32 %v362, %v464
  %v467 = vmul.f32 %v264, %v455
  %v468 = vmul.f32 %v356, %v456
  %v469 = vmul.f32 %v267, %v455
  %v470 = vmul.f32 %v359, %v456
  %v472 = vperm.slane %v466, 0
  %v473 = vperm.slane %v466, 1
  %v476 = vadd.f32 %v467, %v472
  %v477 = vadd.f32 %v468, %v473
  %v478 = vadd.f32 %v469, %v472
  %v479 = vadd.f32 %v470, %v473
  %v480 = vmax.f32 %v476, 0.0
  %v481 = vmax.f32 %v477, 0.0
  %v482 = vmax.f32 %v478, 0.0
  %v483 = vmax.f32 %v479, 0.0
  %484 = vrot.lane.b32.xlu0 %v480, 32
  %v485 = vpop.permute.xlu0 %484
  %486 = vrot.lane.b32.xlu0 %v482, 32
  %v487 = vpop.permute.xlu0 %486
  %488 = vrot.lane.b32.xlu0 %v481, 32
  %v489 = vpop.permute.xlu0 %488
  %490 = vrot.lane.b32.xlu0 %v483, 32
  %v491 = vpop.permute.xlu0 %490
  %v492 = vsel %vm383, %v485, %v489
  %v493 = vsel %vm383, %v487, %v491
  %v494 = vsel %vm383, %v489, %v485
  %v495 = vsel %vm383, %v491, %v487
  %496 = vrot.lane.b32.xlu0 %v480, 96
  %v497 = vpop.permute.xlu0 %496
  %498 = vrot.lane.b32.xlu0 %v482, 96
  %v499 = vpop.permute.xlu0 %498
  %500 = vrot.lane.b32.xlu0 %v481, 96
  %v501 = vpop.permute.xlu0 %500
  %502 = vrot.lane.b32.xlu0 %v483, 96
  %v503 = vpop.permute.xlu0 %502
  %vm504 = vcmp.lt.s32.totalorder %v382, 96
  %v505 = vsel %vm504, %v497, %v501
  %v506 = vsel %vm504, %v499, %v503
  %v507 = vsel %vm504, %v501, %v497
  %v508 = vsel %vm504, %v503, %v499
  %v509 = vld [vmem:[%s2] sm:$0xff]
  %v510 = vld [vmem:[%s2 + $0x8] sm:$0xff]
  %v511 = vld [vmem:[%s2 + $0x10] sm:$0x1]
  %v512 = vld [vmem:[%s2 + $0x18] sm:$0x1]
  %v513 = vperm.slane %v509, 0
  %v514 = vperm.slane %v510, 0
  %v515 = vmul.f32 %v494, %v513
  %v516 = vmul.f32 %v492, %v514
  %v517 = vmul.f32 %v495, %v513
  %v518 = vmul.f32 %v493, %v514
  %v519 = vperm.slane %v509, 1
  %v520 = vperm.slane %v510, 1
  %v521 = vmul.f32 %v480, %v519
  %v522 = vmul.f32 %v481, %v520
  %v523 = vmul.f32 %v482, %v519
  %v524 = vmul.f32 %v483, %v520
  %v525 = vadd.f32 %v515, %v521
  %v526 = vadd.f32 %v516, %v522
  %v527 = vadd.f32 %v517, %v523
  %v528 = vadd.f32 %v518, %v524
  %v529 = vperm.slane %v509, 2
  %v530 = vperm.slane %v510, 2
  %v531 = vmul.f32 %v505, %v529
  %v532 = vmul.f32 %v507, %v530
  %v533 = vmul.f32 %v506, %v529
  %v534 = vmul.f32 %v508, %v530
  %v535 = vadd.f32 %v525, %v531
  %v536 = vadd.f32 %v526, %v532
  %v537 = vadd.f32 %v527, %v533
  %v538 = vadd.f32 %v528, %v534
  %v539 = vperm.slane %v509, 3
  %v540 = vperm.slane %v510, 3
  %v541 = vmul.f32 %v494, %v539
  %v542 = vmul.f32 %v492, %v540
  %v543 = vmul.f32 %v495, %v539
  %v544 = vmul.f32 %v493, %v540
  %v545 = vperm.slane %v509, 4
  %v546 = vperm.slane %v510, 4
  %v547 = vmul.f32 %v480, %v545
  %v548 = vmul.f32 %v481, %v546
  %v549 = vmul.f32 %v482, %v545
  %v550 = vmul.f32 %v483, %v546
  %v551 = vadd.f32 %v541, %v547
  %v552 = vadd.f32 %v542, %v548
  %v553 = vadd.f32 %v543, %v549
  %v554 = vadd.f32 %v544, %v550
  %v555 = vperm.slane %v509, 5
  %v556 = vperm.slane %v510, 5
  %v557 = vmul.f32 %v505, %v555
  %v558 = vmul.f32 %v507, %v556
  %v559 = vmul.f32 %v506, %v555
  %v560 = vmul.f32 %v508, %v556
  %v561 = vadd.f32 %v551, %v557
  %v562 = vadd.f32 %v552, %v558
  %v563 = vadd.f32 %v553, %v559
  %v564 = vadd.f32 %v554, %v560
  %v565 = vperm.slane %v509, 6
  %v566 = vperm.slane %v510, 6
  %v567 = vmul.f32 %v494, %v565
  %v568 = vmul.f32 %v492, %v566
  %v569 = vmul.f32 %v495, %v565
  %v570 = vmul.f32 %v493, %v566
  %v571 = vperm.slane %v509, 7
  %v572 = vperm.slane %v510, 7
  %v573 = vmul.f32 %v480, %v571
  %v574 = vmul.f32 %v481, %v572
  %v575 = vmul.f32 %v482, %v571
  %v576 = vmul.f32 %v483, %v572
  %v577 = vadd.f32 %v567, %v573
  %v578 = vadd.f32 %v568, %v574
  %v579 = vadd.f32 %v569, %v575
  %v580 = vadd.f32 %v570, %v576
  %v581 = vperm.slane %v511, 0
  %v582 = vperm.slane %v512, 0
  %v583 = vmul.f32 %v505, %v581
  %v584 = vmul.f32 %v507, %v582
  %v585 = vmul.f32 %v506, %v581
  %v586 = vmul.f32 %v508, %v582
  %v587 = vadd.f32 %v577, %v583
  %v588 = vadd.f32 %v578, %v584
  %v589 = vadd.f32 %v579, %v585
  %v590 = vadd.f32 %v580, %v586
  %v591 = vld [vmem:[%s4] sm:$0xff]
  %v592 = vld [vmem:[%s4 + $0x8] sm:$0xff]
  %vm593 = vcmask 130048
  %v595 = vsel %vm593, %v591, 0
  %v598 = vsel %vm593, %v592, 0
  %600 = vmatpush.msra.mxu0 0.0
  %601 = vmatpush.msra.mxu0 0.0
  %602 = vmatpush.msra.mxu0 0.0
  %603 = vmatpush.msra.mxu0 0.0
  %604 = vmatpush.msra.mxu0 0.0
  %605 = vmatpush.msra.mxu0 0.0
  %606 = vmatpush.msra.mxu0 0.0
  %607 = vmatpush.msra.mxu0 0.0
  %608 = vmatpush.msra.mxu0 0.0
  %609 = vmatpush.msra.mxu0 0.0
  %610 = vmatpush.msra.mxu0 0.0
  %611 = vmatpush.msra.mxu0 0.0
  %612 = vmatpush.msra.mxu0 0.0
  %613 = vmatpush.msra.mxu0 0.0
  %614 = vmatpush.msra.mxu0 %v537
  %615 = vmatpush.msra.mxu0 %v535
  %616 = vmatmul.f32.gmra.mxu0 %v595
  %v617 = vpop.f32.mrf.mxu0
  %v618 = vadd.f32 %v561, %v617
  %619 = vmatmul.f32.gmra.mxu0 %v598
  %v620 = vpop.f32.mrf.mxu0
  %v621 = vadd.f32 %v563, %v620
  %622 = vdwg.mxu0
  %623 = vmatpush.msra.mxu0 0.0
  %624 = vmatpush.msra.mxu0 0.0
  %625 = vmatpush.msra.mxu0 0.0
  %626 = vmatpush.msra.mxu0 0.0
  %627 = vmatpush.msra.mxu0 0.0
  %628 = vmatpush.msra.mxu0 0.0
  %629 = vmatpush.msra.mxu0 0.0
  %630 = vmatpush.msra.mxu0 0.0
  %631 = vmatpush.msra.mxu0 0.0
  %632 = vmatpush.msra.mxu0 0.0
  %633 = vmatpush.msra.mxu0 0.0
  %634 = vmatpush.msra.mxu0 0.0
  %635 = vmatpush.msra.mxu0 0.0
  %636 = vmatpush.msra.mxu0 0.0
  %637 = vmatpush.msra.mxu0 %v538
  %638 = vmatpush.msra.mxu0 %v536
  %639 = vmatmul.f32.gmra.mxu0 %v595
  %v640 = vpop.f32.mrf.mxu0
  %v641 = vadd.f32 %v562, %v640
  %642 = vmatmul.f32.gmra.mxu0 %v598
  %v643 = vpop.f32.mrf.mxu0
  %v644 = vadd.f32 %v564, %v643
  %645 = vdwg.mxu0
  %v646 = vld [vmem:[%s5] sm:$0xff]
  %v647 = vld [vmem:[%s5 + $0x8] sm:$0xff]
  %v649 = vsel %vm593, %v646, 0
  %v652 = vsel %vm593, %v647, 0
  %654 = vmatpush.msra.mxu0 0.0
  %655 = vmatpush.msra.mxu0 0.0
  %656 = vmatpush.msra.mxu0 0.0
  %657 = vmatpush.msra.mxu0 0.0
  %658 = vmatpush.msra.mxu0 0.0
  %659 = vmatpush.msra.mxu0 0.0
  %660 = vmatpush.msra.mxu0 0.0
  %661 = vmatpush.msra.mxu0 0.0
  %662 = vmatpush.msra.mxu0 0.0
  %663 = vmatpush.msra.mxu0 0.0
  %664 = vmatpush.msra.mxu0 0.0
  %665 = vmatpush.msra.mxu0 0.0
  %666 = vmatpush.msra.mxu0 0.0
  %667 = vmatpush.msra.mxu0 0.0
  %668 = vmatpush.msra.mxu0 %v589
  %669 = vmatpush.msra.mxu0 %v587
  %670 = vmatmul.f32.gmra.mxu0 %v649
  %v671 = vpop.f32.mrf.mxu0
  %v672 = vadd.f32 0.0, %v671
  %673 = vmatmul.f32.gmra.mxu0 %v652
  %v674 = vpop.f32.mrf.mxu0
  %v675 = vadd.f32 0.0, %v674
  %676 = vdwg.mxu0
  %677 = vmatpush.msra.mxu0 0.0
  %678 = vmatpush.msra.mxu0 0.0
  %679 = vmatpush.msra.mxu0 0.0
  %680 = vmatpush.msra.mxu0 0.0
  %681 = vmatpush.msra.mxu0 0.0
  %682 = vmatpush.msra.mxu0 0.0
  %683 = vmatpush.msra.mxu0 0.0
  %684 = vmatpush.msra.mxu0 0.0
  %685 = vmatpush.msra.mxu0 0.0
  %686 = vmatpush.msra.mxu0 0.0
  %687 = vmatpush.msra.mxu0 0.0
  %688 = vmatpush.msra.mxu0 0.0
  %689 = vmatpush.msra.mxu0 0.0
  %690 = vmatpush.msra.mxu0 0.0
  %691 = vmatpush.msra.mxu0 %v590
  %692 = vmatpush.msra.mxu0 %v588
  %693 = vmatmul.f32.gmra.mxu0 %v649
  %v694 = vpop.f32.mrf.mxu0
  %v695 = vadd.f32 0.0, %v694
  %696 = vmatmul.f32.gmra.mxu0 %v652
  %v697 = vpop.f32.mrf.mxu0
  %v698 = vadd.f32 0.0, %v697
  %699 = vdwg.mxu0
  %v700 = vadd.f32 %v618, %v672
  %v701 = vadd.f32 %v641, %v695
  %v702 = vadd.f32 %v621, %v675
  %v703 = vadd.f32 %v644, %v698
  %v704 = vld [vmem:[%s8] sm:$0x3]
  %v705 = vld [vmem:[%s9] sm:$0x3]
  %v706 = vadd.f32 %v700, %v702
  %v707 = vrot.slane %v706, 4
  %v708 = vadd.f32 %v706, %v707
  %v709 = vrot.slane %v708, 2
  %v710 = vadd.f32 %v708, %v709
  %v711 = vrot.slane %v710, 1
  %v712 = vadd.f32 %v710, %v711
  %v713 = vadd.f32 %v701, %v703
  %v714 = vrot.slane %v713, 4
  %v715 = vadd.f32 %v713, %v714
  %v716 = vrot.slane %v715, 2
  %v717 = vadd.f32 %v715, %v716
  %v718 = vrot.slane %v717, 1
  %v719 = vadd.f32 %v717, %v718
  %720 = vrot.lane.b32.xlu0 %v712, 32
  %v721 = vpop.permute.xlu0 %720
  %722 = vrot.lane.b32.xlu0 %v719, 32
  %v723 = vpop.permute.xlu0 %722
  %v724 = vsel %vm383, %v721, %v723
  %v725 = vsel %vm383, %v723, %v721
  %v726 = vadd.f32 %v712, %v725
  %v727 = vadd.f32 %v719, %v724
  %728 = vrot.lane.b32.xlu0 %v726, 64
  %v729 = vpop.permute.xlu0 %728
  %730 = vrot.lane.b32.xlu0 %v727, 64
  %v731 = vpop.permute.xlu0 %730
  %v732 = vsel %vm392, %v729, %v731
  %v733 = vsel %vm392, %v731, %v729
  %v734 = vadd.f32 %v726, %v733
  %v735 = vadd.f32 %v727, %v732
  %v736 = vadd.f32 %v734, %v735
  %v737 = vmul.f32 %v700, %v700
  %v738 = vmul.f32 %v701, %v701
  %v739 = vmul.f32 %v702, %v702
  %v740 = vmul.f32 %v703, %v703
  %v741 = vadd.f32 %v737, %v739
  %v742 = vrot.slane %v741, 4
  %v743 = vadd.f32 %v741, %v742
  %v744 = vrot.slane %v743, 2
  %v745 = vadd.f32 %v743, %v744
  %v746 = vrot.slane %v745, 1
  %v747 = vadd.f32 %v745, %v746
  %v748 = vadd.f32 %v738, %v740
  %v749 = vrot.slane %v748, 4
  %v750 = vadd.f32 %v748, %v749
  %v751 = vrot.slane %v750, 2
  %v752 = vadd.f32 %v750, %v751
  %v753 = vrot.slane %v752, 1
  %v754 = vadd.f32 %v752, %v753
  %755 = vrot.lane.b32.xlu0 %v747, 32
  %v756 = vpop.permute.xlu0 %755
  %757 = vrot.lane.b32.xlu0 %v754, 32
  %v758 = vpop.permute.xlu0 %757
  %v759 = vsel %vm383, %v756, %v758
  %v760 = vsel %vm383, %v758, %v756
  %v761 = vadd.f32 %v747, %v760
  %v762 = vadd.f32 %v754, %v759
  %763 = vrot.lane.b32.xlu0 %v761, 64
  %v764 = vpop.permute.xlu0 %763
  %765 = vrot.lane.b32.xlu0 %v762, 64
  %v766 = vpop.permute.xlu0 %765
  %v767 = vsel %vm392, %v764, %v766
  %v768 = vsel %vm392, %v766, %v764
  %v769 = vadd.f32 %v761, %v768
  %v770 = vadd.f32 %v762, %v767
  %v771 = vadd.f32 %v769, %v770
  %v772 = vmul.f32 %v736, 0.0078125
  %v773 = vmul.f32 %v771, 0.0078125
  %v774 = vmul.f32 %v772, %v772
  %v775 = vsub.f32 %v773, %v774
  %v776 = vadd.f32 %v775, 1e-05
  %v777 = vrsqrt.pop %v776
  %v778 = vmul.f32 %v777, %v776
  %v779 = vmul.f32 %v778, %v777
  %v780 = vmul.f32 0.5, %v779
  %v781 = vsub.f32 1.5, %v780
  %v782 = vmul.f32 %v777, %v781
  %vm783 = vweird.f32 %v776
  %vm784 = vweird.f32 %v777
  %vm785 = vmor %vm783, %vm784
  %v786 = vsel %vm785, %v777, %v782
  %v788 = vrot.slane %v786, 7
  %v789 = vsel %vm450, %v786, %v788
  %v791 = vmul.f32 %v704, %v789
  %v793 = vperm.slane %v791, 0
  %v794 = vperm.slane %v791, 1
  %v797 = vmul.f32 %v772, %v793
  %v798 = vmul.f32 %v772, %v794
  %v801 = vrot.slane %v798, 7
  %v802 = vsel %vm450, %v797, %v801
  %v804 = vsub.f32 %v705, %v802
  %v805 = vmul.f32 %v700, %v793
  %v806 = vmul.f32 %v701, %v794
  %v807 = vmul.f32 %v702, %v793
  %v808 = vmul.f32 %v703, %v794
  %v810 = vperm.slane %v804, 0
  %v811 = vperm.slane %v804, 1
  %v814 = vadd.f32 %v805, %v810
  %v815 = vadd.f32 %v806, %v811
  %v816 = vadd.f32 %v807, %v810
  %v817 = vadd.f32 %v808, %v811
  %v818 = vmax.f32 %v814, 0.0
  %v819 = vmax.f32 %v815, 0.0
  %v820 = vmax.f32 %v816, 0.0
  %v821 = vmax.f32 %v817, 0.0
  %v822 = vld [vmem:[%s3] sm:$0xff]
  %v823 = vld [vmem:[%s3 + $0x8] sm:$0xff]
  %v824 = vld [vmem:[%s3 + $0x10] sm:$0xff]
  %v825 = vld [vmem:[%s3 + $0x18] sm:$0xff]
  %v826 = vld [vmem:[%s3 + $0x20] sm:$0xff]
  %v827 = vld [vmem:[%s3 + $0x28] sm:$0xff]
  %v828 = vld [vmem:[%s3 + $0x30] sm:$0xff]
  %v829 = vld [vmem:[%s3 + $0x38] sm:$0xff]
  %v830 = vld [vmem:[%s3 + $0x40] sm:$0xff]
  %v831 = vld [vmem:[%s3 + $0x48] sm:$0xff]
  %v832 = vld [vmem:[%s3 + $0x50] sm:$0xff]
  %v833 = vld [vmem:[%s3 + $0x58] sm:$0xff]
  %v834 = vld [vmem:[%s3 + $0x60] sm:$0xff]
  %v835 = vld [vmem:[%s3 + $0x68] sm:$0xff]
  %v836 = vld [vmem:[%s3 + $0x70] sm:$0xff]
  %v837 = vld [vmem:[%s3 + $0x78] sm:$0xff]
  %v838 = vld [vmem:[%s3 + $0x80] sm:$0xff]
  %v839 = vld [vmem:[%s3 + $0x88] sm:$0xff]
  %v840 = vld [vmem:[%s3 + $0x90] sm:$0xff]
  %v841 = vld [vmem:[%s3 + $0x98] sm:$0xff]
  %v842 = vld [vmem:[%s3 + $0xa0] sm:$0xff]
  %v843 = vld [vmem:[%s3 + $0xa8] sm:$0xff]
  %v844 = vld [vmem:[%s3 + $0xb0] sm:$0xff]
  %v845 = vld [vmem:[%s3 + $0xb8] sm:$0xff]
  %v846 = vld [vmem:[%s3 + $0xc0] sm:$0xff]
  %v847 = vld [vmem:[%s3 + $0xc8] sm:$0xff]
  %v848 = vld [vmem:[%s3 + $0xd0] sm:$0xff]
  %v849 = vld [vmem:[%s3 + $0xd8] sm:$0xff]
  %v850 = vld [vmem:[%s3 + $0xe0] sm:$0xff]
  %v851 = vld [vmem:[%s3 + $0xe8] sm:$0xff]
  %v852 = vld [vmem:[%s3 + $0xf0] sm:$0xff]
  %v853 = vld [vmem:[%s3 + $0xf8] sm:$0xff]
  %v854 = vld [vmem:[%s3 + $0x100] sm:$0xff]
  %v855 = vld [vmem:[%s3 + $0x108] sm:$0xff]
  %v856 = vld [vmem:[%s3 + $0x110] sm:$0xff]
  %v857 = vld [vmem:[%s3 + $0x118] sm:$0xff]
  %v858 = vld [vmem:[%s3 + $0x120] sm:$0xff]
  %v859 = vld [vmem:[%s3 + $0x128] sm:$0xff]
  %v860 = vld [vmem:[%s3 + $0x130] sm:$0xff]
  %v861 = vld [vmem:[%s3 + $0x138] sm:$0xff]
  %v862 = vld [vmem:[%s3 + $0x140] sm:$0xff]
  %v863 = vld [vmem:[%s3 + $0x148] sm:$0xff]
  %v864 = vld [vmem:[%s3 + $0x150] sm:$0xff]
  %v865 = vld [vmem:[%s3 + $0x158] sm:$0xff]
  %v866 = vld [vmem:[%s3 + $0x160] sm:$0xff]
  %v867 = vld [vmem:[%s3 + $0x168] sm:$0xff]
  %v868 = vld [vmem:[%s3 + $0x170] sm:$0xff]
  %v869 = vld [vmem:[%s3 + $0x178] sm:$0xff]
  %v870 = vld [vmem:[%s3 + $0x180] sm:$0xff]
  %v871 = vld [vmem:[%s3 + $0x188] sm:$0xff]
  %v872 = vld [vmem:[%s3 + $0x190] sm:$0xff]
  %v873 = vld [vmem:[%s3 + $0x198] sm:$0xff]
  %v874 = vld [vmem:[%s3 + $0x1a0] sm:$0xff]
  %v875 = vld [vmem:[%s3 + $0x1a8] sm:$0xff]
  %v876 = vld [vmem:[%s3 + $0x1b0] sm:$0xff]
  %v877 = vld [vmem:[%s3 + $0x1b8] sm:$0xff]
  %v878 = vld [vmem:[%s3 + $0x1c0] sm:$0xff]
  %v879 = vld [vmem:[%s3 + $0x1c8] sm:$0xff]
  %v880 = vld [vmem:[%s3 + $0x1d0] sm:$0xff]
  %v881 = vld [vmem:[%s3 + $0x1d8] sm:$0xff]
  %v882 = vld [vmem:[%s3 + $0x1e0] sm:$0xff]
  %v883 = vld [vmem:[%s3 + $0x1e8] sm:$0xff]
  %v884 = vld [vmem:[%s3 + $0x1f0] sm:$0xff]
  %v885 = vld [vmem:[%s3 + $0x1f8] sm:$0xff]
  %v886 = vld [vmem:[%s3 + $0x200] sm:$0xff]
  %v887 = vld [vmem:[%s3 + $0x208] sm:$0xff]
  %v888 = vld [vmem:[%s3 + $0x210] sm:$0xff]
  %v889 = vld [vmem:[%s3 + $0x218] sm:$0xff]
  %v890 = vld [vmem:[%s3 + $0x220] sm:$0xff]
  %v891 = vld [vmem:[%s3 + $0x228] sm:$0xff]
  %v892 = vld [vmem:[%s3 + $0x230] sm:$0xff]
  %v893 = vld [vmem:[%s3 + $0x238] sm:$0xff]
  %v894 = vld [vmem:[%s3 + $0x240] sm:$0xff]
  %v895 = vld [vmem:[%s3 + $0x248] sm:$0xff]
  %v896 = vld [vmem:[%s3 + $0x250] sm:$0xff]
  %v897 = vld [vmem:[%s3 + $0x258] sm:$0xff]
  %v898 = vld [vmem:[%s3 + $0x260] sm:$0xff]
  %v899 = vld [vmem:[%s3 + $0x268] sm:$0xff]
  %v900 = vld [vmem:[%s3 + $0x270] sm:$0xff]
  %v901 = vld [vmem:[%s3 + $0x278] sm:$0xff]
  %v902 = vld [vmem:[%s3 + $0x280] sm:$0xff]
  %v903 = vld [vmem:[%s3 + $0x288] sm:$0xff]
  %v904 = vld [vmem:[%s3 + $0x290] sm:$0xff]
  %v905 = vld [vmem:[%s3 + $0x298] sm:$0xff]
  %v906 = vld [vmem:[%s3 + $0x2a0] sm:$0xff]
  %v907 = vld [vmem:[%s3 + $0x2a8] sm:$0xff]
  %v908 = vld [vmem:[%s3 + $0x2b0] sm:$0xff]
  %v909 = vld [vmem:[%s3 + $0x2b8] sm:$0xff]
  %v910 = vld [vmem:[%s3 + $0x2c0] sm:$0xff]
  %v911 = vld [vmem:[%s3 + $0x2c8] sm:$0xff]
  %v912 = vld [vmem:[%s3 + $0x2d0] sm:$0xff]
  %v913 = vld [vmem:[%s3 + $0x2d8] sm:$0xff]
  %v914 = vld [vmem:[%s3 + $0x2e0] sm:$0xff]
  %v915 = vld [vmem:[%s3 + $0x2e8] sm:$0xff]
  %v916 = vld [vmem:[%s3 + $0x2f0] sm:$0xff]
  %v917 = vld [vmem:[%s3 + $0x2f8] sm:$0xff]
  %v918 = vld [vmem:[%s3 + $0x300] sm:$0xff]
  %v919 = vld [vmem:[%s3 + $0x308] sm:$0xff]
  %v920 = vld [vmem:[%s3 + $0x310] sm:$0xff]
  %v921 = vld [vmem:[%s3 + $0x318] sm:$0xff]
  %v922 = vld [vmem:[%s3 + $0x320] sm:$0xff]
  %v923 = vld [vmem:[%s3 + $0x328] sm:$0xff]
  %v924 = vld [vmem:[%s3 + $0x330] sm:$0xff]
  %v925 = vld [vmem:[%s3 + $0x338] sm:$0xff]
  %v926 = vld [vmem:[%s3 + $0x340] sm:$0xff]
  %v927 = vld [vmem:[%s3 + $0x348] sm:$0xff]
  %v928 = vld [vmem:[%s3 + $0x350] sm:$0xff]
  %v929 = vld [vmem:[%s3 + $0x358] sm:$0xff]
  %v930 = vld [vmem:[%s3 + $0x360] sm:$0xff]
  %v931 = vld [vmem:[%s3 + $0x368] sm:$0xff]
  %v932 = vld [vmem:[%s3 + $0x370] sm:$0xff]
  %v933 = vld [vmem:[%s3 + $0x378] sm:$0xff]
  %v934 = vld [vmem:[%s3 + $0x380] sm:$0xff]
  %v935 = vld [vmem:[%s3 + $0x388] sm:$0xff]
  %v936 = vld [vmem:[%s3 + $0x390] sm:$0xff]
  %v937 = vld [vmem:[%s3 + $0x398] sm:$0xff]
  %v938 = vld [vmem:[%s3 + $0x3a0] sm:$0xff]
  %v939 = vld [vmem:[%s3 + $0x3a8] sm:$0xff]
  %v940 = vld [vmem:[%s3 + $0x3b0] sm:$0xff]
  %v941 = vld [vmem:[%s3 + $0x3b8] sm:$0xff]
  %v942 = vld [vmem:[%s3 + $0x3c0] sm:$0xff]
  %v943 = vld [vmem:[%s3 + $0x3c8] sm:$0xff]
  %v944 = vld [vmem:[%s3 + $0x3d0] sm:$0xff]
  %v945 = vld [vmem:[%s3 + $0x3d8] sm:$0xff]
  %v946 = vld [vmem:[%s3 + $0x3e0] sm:$0xff]
  %v947 = vld [vmem:[%s3 + $0x3e8] sm:$0xff]
  %v948 = vld [vmem:[%s3 + $0x3f0] sm:$0xff]
  %v949 = vld [vmem:[%s3 + $0x3f8] sm:$0xff]
  %950 = vmatpush.msra.mxu0 %v882
  %951 = vmatpush.msra.mxu0 %v878
  %952 = vmatpush.msra.mxu0 %v874
  %953 = vmatpush.msra.mxu0 %v870
  %954 = vmatpush.msra.mxu0 %v866
  %955 = vmatpush.msra.mxu0 %v862
  %956 = vmatpush.msra.mxu0 %v858
  %957 = vmatpush.msra.mxu0 %v854
  %958 = vmatpush.msra.mxu0 %v850
  %959 = vmatpush.msra.mxu0 %v846
  %960 = vmatpush.msra.mxu0 %v842
  %961 = vmatpush.msra.mxu0 %v838
  %962 = vmatpush.msra.mxu0 %v834
  %963 = vmatpush.msra.mxu0 %v830
  %964 = vmatpush.msra.mxu0 %v826
  %965 = vmatpush.msra.mxu0 %v822
  %966 = vmatmul.f32.gmra.mxu0 %v818
  %v967 = vpop.f32.mrf.mxu0
  %v968 = vadd.f32 0.0, %v967
  %969 = vmatmul.f32.gmra.mxu0 %v820
  %v970 = vpop.f32.mrf.mxu0
  %v971 = vadd.f32 0.0, %v970
  %972 = vdwg.mxu0
  %973 = vmatpush.msra.mxu0 %v946
  %974 = vmatpush.msra.mxu0 %v942
  %975 = vmatpush.msra.mxu0 %v938
  %976 = vmatpush.msra.mxu0 %v934
  %977 = vmatpush.msra.mxu0 %v930
  %978 = vmatpush.msra.mxu0 %v926
  %979 = vmatpush.msra.mxu0 %v922
  %980 = vmatpush.msra.mxu0 %v918
  %981 = vmatpush.msra.mxu0 %v914
  %982 = vmatpush.msra.mxu0 %v910
  %983 = vmatpush.msra.mxu0 %v906
  %984 = vmatpush.msra.mxu0 %v902
  %985 = vmatpush.msra.mxu0 %v898
  %986 = vmatpush.msra.mxu0 %v894
  %987 = vmatpush.msra.mxu0 %v890
  %988 = vmatpush.msra.mxu0 %v886
  %989 = vmatmul.f32.gmra.mxu0 %v819
  %v990 = vpop.f32.mrf.mxu0
  %v991 = vadd.f32 %v968, %v990
  %992 = vmatmul.f32.gmra.mxu0 %v821
  %v993 = vpop.f32.mrf.mxu0
  %v994 = vadd.f32 %v971, %v993
  %995 = vdwg.mxu0
  %996 = vmatpush.msra.mxu0 %v883
  %997 = vmatpush.msra.mxu0 %v879
  %998 = vmatpush.msra.mxu0 %v875
  %999 = vmatpush.msra.mxu0 %v871
  %1000 = vmatpush.msra.mxu0 %v867
  %1001 = vmatpush.msra.mxu0 %v863
  %1002 = vmatpush.msra.mxu0 %v859
  %1003 = vmatpush.msra.mxu0 %v855
  %1004 = vmatpush.msra.mxu0 %v851
  %1005 = vmatpush.msra.mxu0 %v847
  %1006 = vmatpush.msra.mxu0 %v843
  %1007 = vmatpush.msra.mxu0 %v839
  %1008 = vmatpush.msra.mxu0 %v835
  %1009 = vmatpush.msra.mxu0 %v831
  %1010 = vmatpush.msra.mxu0 %v827
  %1011 = vmatpush.msra.mxu0 %v823
  %1012 = vmatmul.f32.gmra.mxu0 %v818
  %v1013 = vpop.f32.mrf.mxu0
  %v1014 = vadd.f32 0.0, %v1013
  %1015 = vmatmul.f32.gmra.mxu0 %v820
  %v1016 = vpop.f32.mrf.mxu0
  %v1017 = vadd.f32 0.0, %v1016
  %1018 = vdwg.mxu0
  %1019 = vmatpush.msra.mxu0 %v947
  %1020 = vmatpush.msra.mxu0 %v943
  %1021 = vmatpush.msra.mxu0 %v939
  %1022 = vmatpush.msra.mxu0 %v935
  %1023 = vmatpush.msra.mxu0 %v931
  %1024 = vmatpush.msra.mxu0 %v927
  %1025 = vmatpush.msra.mxu0 %v923
  %1026 = vmatpush.msra.mxu0 %v919
  %1027 = vmatpush.msra.mxu0 %v915
  %1028 = vmatpush.msra.mxu0 %v911
  %1029 = vmatpush.msra.mxu0 %v907
  %1030 = vmatpush.msra.mxu0 %v903
  %1031 = vmatpush.msra.mxu0 %v899
  %1032 = vmatpush.msra.mxu0 %v895
  %1033 = vmatpush.msra.mxu0 %v891
  %1034 = vmatpush.msra.mxu0 %v887
  %1035 = vmatmul.f32.gmra.mxu0 %v819
  %v1036 = vpop.f32.mrf.mxu0
  %v1037 = vadd.f32 %v1014, %v1036
  %1038 = vmatmul.f32.gmra.mxu0 %v821
  %v1039 = vpop.f32.mrf.mxu0
  %v1040 = vadd.f32 %v1017, %v1039
  %1041 = vdwg.mxu0
  %1042 = vmatpush.msra.mxu0 %v884
  %1043 = vmatpush.msra.mxu0 %v880
  %1044 = vmatpush.msra.mxu0 %v876
  %1045 = vmatpush.msra.mxu0 %v872
  %1046 = vmatpush.msra.mxu0 %v868
  %1047 = vmatpush.msra.mxu0 %v864
  %1048 = vmatpush.msra.mxu0 %v860
  %1049 = vmatpush.msra.mxu0 %v856
  %1050 = vmatpush.msra.mxu0 %v852
  %1051 = vmatpush.msra.mxu0 %v848
  %1052 = vmatpush.msra.mxu0 %v844
  %1053 = vmatpush.msra.mxu0 %v840
  %1054 = vmatpush.msra.mxu0 %v836
  %1055 = vmatpush.msra.mxu0 %v832
  %1056 = vmatpush.msra.mxu0 %v828
  %1057 = vmatpush.msra.mxu0 %v824
  %1058 = vmatmul.f32.gmra.mxu0 %v818
  %v1059 = vpop.f32.mrf.mxu0
  %v1060 = vadd.f32 0.0, %v1059
  %1061 = vmatmul.f32.gmra.mxu0 %v820
  %v1062 = vpop.f32.mrf.mxu0
  %v1063 = vadd.f32 0.0, %v1062
  %1064 = vdwg.mxu0
  %1065 = vmatpush.msra.mxu0 %v948
  %1066 = vmatpush.msra.mxu0 %v944
  %1067 = vmatpush.msra.mxu0 %v940
  %1068 = vmatpush.msra.mxu0 %v936
  %1069 = vmatpush.msra.mxu0 %v932
  %1070 = vmatpush.msra.mxu0 %v928
  %1071 = vmatpush.msra.mxu0 %v924
  %1072 = vmatpush.msra.mxu0 %v920
  %1073 = vmatpush.msra.mxu0 %v916
  %1074 = vmatpush.msra.mxu0 %v912
  %1075 = vmatpush.msra.mxu0 %v908
  %1076 = vmatpush.msra.mxu0 %v904
  %1077 = vmatpush.msra.mxu0 %v900
  %1078 = vmatpush.msra.mxu0 %v896
  %1079 = vmatpush.msra.mxu0 %v892
  %1080 = vmatpush.msra.mxu0 %v888
  %1081 = vmatmul.f32.gmra.mxu0 %v819
  %v1082 = vpop.f32.mrf.mxu0
  %v1083 = vadd.f32 %v1060, %v1082
  %1084 = vmatmul.f32.gmra.mxu0 %v821
  %v1085 = vpop.f32.mrf.mxu0
  %v1086 = vadd.f32 %v1063, %v1085
  %1087 = vdwg.mxu0
  %1088 = vmatpush.msra.mxu0 %v885
  %1089 = vmatpush.msra.mxu0 %v881
  %1090 = vmatpush.msra.mxu0 %v877
  %1091 = vmatpush.msra.mxu0 %v873
  %1092 = vmatpush.msra.mxu0 %v869
  %1093 = vmatpush.msra.mxu0 %v865
  %1094 = vmatpush.msra.mxu0 %v861
  %1095 = vmatpush.msra.mxu0 %v857
  %1096 = vmatpush.msra.mxu0 %v853
  %1097 = vmatpush.msra.mxu0 %v849
  %1098 = vmatpush.msra.mxu0 %v845
  %1099 = vmatpush.msra.mxu0 %v841
  %1100 = vmatpush.msra.mxu0 %v837
  %1101 = vmatpush.msra.mxu0 %v833
  %1102 = vmatpush.msra.mxu0 %v829
  %1103 = vmatpush.msra.mxu0 %v825
  %1104 = vmatmul.f32.gmra.mxu0 %v818
  %v1105 = vpop.f32.mrf.mxu0
  %v1106 = vadd.f32 0.0, %v1105
  %1107 = vmatmul.f32.gmra.mxu0 %v820
  %v1108 = vpop.f32.mrf.mxu0
  %v1109 = vadd.f32 0.0, %v1108
  %1110 = vdwg.mxu0
  %1111 = vmatpush.msra.mxu0 %v949
  %1112 = vmatpush.msra.mxu0 %v945
  %1113 = vmatpush.msra.mxu0 %v941
  %1114 = vmatpush.msra.mxu0 %v937
  %1115 = vmatpush.msra.mxu0 %v933
  %1116 = vmatpush.msra.mxu0 %v929
  %1117 = vmatpush.msra.mxu0 %v925
  %1118 = vmatpush.msra.mxu0 %v921
  %1119 = vmatpush.msra.mxu0 %v917
  %1120 = vmatpush.msra.mxu0 %v913
  %1121 = vmatpush.msra.mxu0 %v909
  %1122 = vmatpush.msra.mxu0 %v905
  %1123 = vmatpush.msra.mxu0 %v901
  %1124 = vmatpush.msra.mxu0 %v897
  %1125 = vmatpush.msra.mxu0 %v893
  %1126 = vmatpush.msra.mxu0 %v889
  %1127 = vmatmul.f32.gmra.mxu0 %v819
  %v1128 = vpop.f32.mrf.mxu0
  %v1129 = vadd.f32 %v1106, %v1128
  %1130 = vmatmul.f32.gmra.mxu0 %v821
  %v1131 = vpop.f32.mrf.mxu0
  %v1132 = vadd.f32 %v1109, %v1131
  %1133 = vdwg.mxu0
  %v1134 = vld [vmem:[%s10] sm:$0xf]
  %v1135 = vld [vmem:[%s11] sm:$0xf]
  %v1136 = vadd.f32 %v991, %v994
  %v1137 = vrot.slane %v1136, 4
  %v1138 = vadd.f32 %v1136, %v1137
  %v1139 = vrot.slane %v1138, 2
  %v1140 = vadd.f32 %v1138, %v1139
  %v1141 = vrot.slane %v1140, 1
  %v1142 = vadd.f32 %v1140, %v1141
  %v1143 = vadd.f32 %v1037, %v1040
  %v1144 = vrot.slane %v1143, 4
  %v1145 = vadd.f32 %v1143, %v1144
  %v1146 = vrot.slane %v1145, 2
  %v1147 = vadd.f32 %v1145, %v1146
  %v1148 = vrot.slane %v1147, 1
  %v1149 = vadd.f32 %v1147, %v1148
  %v1150 = vadd.f32 %v1083, %v1086
  %v1151 = vrot.slane %v1150, 4
  %v1152 = vadd.f32 %v1150, %v1151
  %v1153 = vrot.slane %v1152, 2
  %v1154 = vadd.f32 %v1152, %v1153
  %v1155 = vrot.slane %v1154, 1
  %v1156 = vadd.f32 %v1154, %v1155
  %v1157 = vadd.f32 %v1129, %v1132
  %v1158 = vrot.slane %v1157, 4
  %v1159 = vadd.f32 %v1157, %v1158
  %v1160 = vrot.slane %v1159, 2
  %v1161 = vadd.f32 %v1159, %v1160
  %v1162 = vrot.slane %v1161, 1
  %v1163 = vadd.f32 %v1161, %v1162
  %1164 = vrot.lane.b32.xlu0 %v1142, 64
  %v1165 = vpop.permute.xlu0 %1164
  %1166 = vrot.lane.b32.xlu0 %v1149, 64
  %v1167 = vpop.permute.xlu0 %1166
  %1168 = vrot.lane.b32.xlu0 %v1156, 64
  %v1169 = vpop.permute.xlu0 %1168
  %1170 = vrot.lane.b32.xlu0 %v1163, 64
  %v1171 = vpop.permute.xlu0 %1170
  %v1172 = vsel %vm392, %v1169, %v1171
  %v1173 = vsel %vm392, %v1167, %v1169
  %v1174 = vsel %vm392, %v1165, %v1167
  %v1175 = vsel %vm392, %v1171, %v1165
  %v1176 = vadd.f32 %v1142, %v1175
  %v1177 = vadd.f32 %v1149, %v1174
  %v1178 = vadd.f32 %v1156, %v1173
  %v1179 = vadd.f32 %v1163, %v1172
  %v1180 = vadd.f32 %v1176, %v1179
  %v1181 = vadd.f32 %v1177, %v1176
  %v1182 = vadd.f32 %v1178, %v1177
  %v1183 = vadd.f32 %v1179, %v1178
  %v1184 = vadd.f32 %v1180, %v1182
  %v1185 = vadd.f32 %v1181, %v1183
  %v1186 = vmul.f32 %v991, %v991
  %v1187 = vmul.f32 %v1037, %v1037
  %v1188 = vmul.f32 %v1083, %v1083
  %v1189 = vmul.f32 %v1129, %v1129
  %v1190 = vmul.f32 %v994, %v994
  %v1191 = vmul.f32 %v1040, %v1040
  %v1192 = vmul.f32 %v1086, %v1086
  %v1193 = vmul.f32 %v1132, %v1132
  %v1194 = vadd.f32 %v1186, %v1190
  %v1195 = vrot.slane %v1194, 4
  %v1196 = vadd.f32 %v1194, %v1195
  %v1197 = vrot.slane %v1196, 2
  %v1198 = vadd.f32 %v1196, %v1197
  %v1199 = vrot.slane %v1198, 1
  %v1200 = vadd.f32 %v1198, %v1199
  %v1201 = vadd.f32 %v1187, %v1191
  %v1202 = vrot.slane %v1201, 4
  %v1203 = vadd.f32 %v1201, %v1202
  %v1204 = vrot.slane %v1203, 2
  %v1205 = vadd.f32 %v1203, %v1204
  %v1206 = vrot.slane %v1205, 1
  %v1207 = vadd.f32 %v1205, %v1206
  %v1208 = vadd.f32 %v1188, %v1192
  %v1209 = vrot.slane %v1208, 4
  %v1210 = vadd.f32 %v1208, %v1209
  %v1211 = vrot.slane %v1210, 2
  %v1212 = vadd.f32 %v1210, %v1211
  %v1213 = vrot.slane %v1212, 1
  %v1214 = vadd.f32 %v1212, %v1213
  %v1215 = vadd.f32 %v1189, %v1193
  %v1216 = vrot.slane %v1215, 4
  %v1217 = vadd.f32 %v1215, %v1216
  %v1218 = vrot.slane %v1217, 2
  %v1219 = vadd.f32 %v1217, %v1218
  %v1220 = vrot.slane %v1219, 1
  %v1221 = vadd.f32 %v1219, %v1220
  %1222 = vrot.lane.b32.xlu0 %v1200, 64
  %v1223 = vpop.permute.xlu0 %1222
  %1224 = vrot.lane.b32.xlu0 %v1207, 64
  %v1225 = vpop.permute.xlu0 %1224
  %1226 = vrot.lane.b32.xlu0 %v1214, 64
  %v1227 = vpop.permute.xlu0 %1226
  %1228 = vrot.lane.b32.xlu0 %v1221, 64
  %v1229 = vpop.permute.xlu0 %1228
  %v1230 = vsel %vm392, %v1227, %v1229
  %v1231 = vsel %vm392, %v1225, %v1227
  %v1232 = vsel %vm392, %v1223, %v1225
  %v1233 = vsel %vm392, %v1229, %v1223
  %v1234 = vadd.f32 %v1200, %v1233
  %v1235 = vadd.f32 %v1207, %v1232
  %v1236 = vadd.f32 %v1214, %v1231
  %v1237 = vadd.f32 %v1221, %v1230
  %v1238 = vadd.f32 %v1234, %v1237
  %v1239 = vadd.f32 %v1235, %v1234
  %v1240 = vadd.f32 %v1236, %v1235
  %v1241 = vadd.f32 %v1237, %v1236
  %v1242 = vadd.f32 %v1238, %v1240
  %v1243 = vadd.f32 %v1239, %v1241
  %v1244 = vmul.f32 %v1184, 0.0078125
  %v1245 = vmul.f32 %v1185, 0.0078125
  %v1246 = vmul.f32 %v1242, 0.0078125
  %v1247 = vmul.f32 %v1243, 0.0078125
  %v1248 = vmul.f32 %v1244, %v1244
  %v1249 = vmul.f32 %v1245, %v1245
  %v1250 = vsub.f32 %v1246, %v1248
  %v1251 = vsub.f32 %v1247, %v1249
  %v1252 = vadd.f32 %v1250, 1e-05
  %v1253 = vadd.f32 %v1251, 1e-05
  %v1254 = vrsqrt.pop %v1252
  %v1255 = vmul.f32 %v1254, %v1252
  %v1256 = vmul.f32 %v1255, %v1254
  %v1257 = vmul.f32 0.5, %v1256
  %v1258 = vsub.f32 1.5, %v1257
  %v1259 = vmul.f32 %v1254, %v1258
  %vm1260 = vweird.f32 %v1252
  %vm1261 = vweird.f32 %v1254
  %vm1262 = vmor %vm1260, %vm1261
  %v1263 = vsel %vm1262, %v1254, %v1259
  %v1264 = vrsqrt.pop %v1253
  %v1265 = vmul.f32 %v1264, %v1253
  %v1266 = vmul.f32 %v1265, %v1264
  %v1267 = vmul.f32 0.5, %v1266
  %v1268 = vsub.f32 1.5, %v1267
  %v1269 = vmul.f32 %v1264, %v1268
  %vm1270 = vweird.f32 %v1253
  %vm1271 = vweird.f32 %v1264
  %vm1272 = vmor %vm1270, %vm1271
  %v1273 = vsel %vm1272, %v1264, %v1269
  %v1276 = vrot.slane %v1273, 7
  %v1277 = vrot.slane %v1263, 6
  %v1278 = vrot.slane %v1273, 5
  %v1279 = vsel %vm450, %v1263, %v1276
  %vm1280 = vcmask 1042434
  %v1281 = vsel %vm1280, %v1277, %v1278
  %vm1282 = vcmask 1041408
  %v1283 = vsel %vm1282, %v1279, %v1281
  %v1285 = vmul.f32 %v1134, %v1283
  %v1287 = vperm.slane %v1285, 0
  %v1288 = vperm.slane %v1285, 1
  %v1289 = vperm.slane %v1285, 2
  %v1290 = vperm.slane %v1285, 3
  %v1295 = vmul.f32 %v1244, %v1287
  %v1296 = vmul.f32 %v1245, %v1288
  %v1297 = vmul.f32 %v1244, %v1289
  %v1298 = vmul.f32 %v1245, %v1290
  %v1303 = vrot.slane %v1296, 7
  %v1304 = vrot.slane %v1297, 6
  %v1305 = vrot.slane %v1298, 5
  %v1306 = vsel %vm450, %v1295, %v1303
  %v1307 = vsel %vm1280, %v1304, %v1305
  %v1308 = vsel %vm1282, %v1306, %v1307
  %v1310 = vsub.f32 %v1135, %v1308
  %v1311 = vmul.f32 %v991, %v1287
  %v1312 = vmul.f32 %v1037, %v1288
  %v1313 = vmul.f32 %v1083, %v1289
  %v1314 = vmul.f32 %v1129, %v1290
  %v1315 = vmul.f32 %v994, %v1287
  %v1316 = vmul.f32 %v1040, %v1288
  %v1317 = vmul.f32 %v1086, %v1289
  %v1318 = vmul.f32 %v1132, %v1290
  %v1320 = vperm.slane %v1310, 0
  %v1321 = vperm.slane %v1310, 1
  %v1322 = vperm.slane %v1310, 2
  %v1323 = vperm.slane %v1310, 3
  %v1328 = vadd.f32 %v1311, %v1320
  %v1329 = vadd.f32 %v1312, %v1321
  %v1330 = vadd.f32 %v1313, %v1322
  %v1331 = vadd.f32 %v1314, %v1323
  %v1332 = vadd.f32 %v1315, %v1320
  %v1333 = vadd.f32 %v1316, %v1321
  %v1334 = vadd.f32 %v1317, %v1322
  %v1335 = vadd.f32 %v1318, %v1323
  %v1336 = vadd.f32 %v1328, %v41
  %v1337 = vadd.f32 %v1329, %v42
  %v1338 = vadd.f32 %v1330, %v43
  %v1339 = vadd.f32 %v1331, %v44
  %v1340 = vadd.f32 %v1332, %v45
  %v1341 = vadd.f32 %v1333, %v46
  %v1342 = vadd.f32 %v1334, %v47
  %v1343 = vadd.f32 %v1335, %v48
  %v1344 = vmax.f32 %v1336, 0.0
  %v1345 = vmax.f32 %v1337, 0.0
  %v1346 = vmax.f32 %v1338, 0.0
  %v1347 = vmax.f32 %v1339, 0.0
  %v1348 = vmax.f32 %v1340, 0.0
  %v1349 = vmax.f32 %v1341, 0.0
  %v1350 = vmax.f32 %v1342, 0.0
  %v1351 = vmax.f32 %v1343, 0.0
  %1352 = vst [vmem:[%s12] sm:$0xff] %v1344
  %1353 = vst [vmem:[%s12 + $0x8] sm:$0xff] %v1345
  %1354 = vst [vmem:[%s12 + $0x10] sm:$0xff] %v1346
  %1355 = vst [vmem:[%s12 + $0x18] sm:$0xff] %v1347
  %1356 = vst [vmem:[%s12 + $0x20] sm:$0xff] %v1348
  %1357 = vst [vmem:[%s12 + $0x28] sm:$0xff] %v1349
  %1358 = vst [vmem:[%s12 + $0x30] sm:$0xff] %v1350
  %1359 = vst [vmem:[%s12 + $0x38] sm:$0xff] %v1351
  // Predicated region
  $region50: #{bottleneck_forward.1} parent=0 // pred_check
    _
  $region51: #{bottleneck_forward.1} parent=0 // pred_check_branch
    %1361 = sbr.rel (0) target = $region53
  $region52: #{bottleneck_forward.1} parent=0 // pred_region
    _
  $region53: #{bottleneck_forward.1} parent=0 // pred_fallthru
    _
  // Predicated region
  $region54: #{bottleneck_forward.1} parent=0 // pred_check
    _
  $region55: #{bottleneck_forward.1} parent=0 // pred_check_branch
    %1363 = sbr.rel (0) target = $region57
  $region56: #{bottleneck_forward.1} parent=0 // pred_region
    _
  $region57: #{bottleneck_forward.1} parent=0 // pred_fallthru
    _

</llo_original>
